<compile_context>
chip_gen: v7x
topology: tpu7x:2x2x1
jax: 0.10.0
libtpu: 0.0.40
codegen_flags: <defaults>
</compile_context>

<pallas_src>
import functools

import numpy as np
import jax
import jax.numpy as jnp
from jax.experimental import pallas as pl
from jax.experimental.pallas import tpu as pltpu  # noqa: F401  (TPU backend)

N_POS = 36        # final pooled length (fc1 expects 64 * 36 features)
N_GRP = 18        # two final positions are computed per kernel row ("group")
RF_G = 14         # input rows in the receptive field of one 2-position group
C1, C2, H = 32, 64, 128
K = 3


# ----------------------------------------------------------------------------
# Fused kernel: conv1+ReLU+pool -> conv2+ReLU+pool -> flatten -> fc1+ReLU
# Single invocation; rows = (position-group g major, [branch,batch] minor).
# ----------------------------------------------------------------------------
def _convnet_fused_kernel(x_ref, w1_ref, b1_ref, w2_ref, b2_ref, w3_ref, fb_ref,
                          o_ref, *, n_grp, nb):
    # x_ref : (n_grp*nb, RF_G*Cin) bf16  im2col (g major, b minor)
    # w1_ref: (RF_G*Cin, 512)      bf16  conv1 @ 12 positions, cols [even|pad|odd|pad]
    # b1_ref: (1, 512)             f32
    # w2_ref: (256, 256)           bf16  conv2 @ 4 positions, cols [even|odd]
    # b2_ref: (1, 256)             f32
    # w3_ref: (n_grp, 128, 128)    bf16  fc1 weight per position-pair
    # fb_ref: (1, 128)             f32
    # o_ref : (nb, 128)            f32   embeddings (lane-dense full-tile store)

    # conv1 + bias + ReLU + MaxPool(2): one matmul; pool = aligned lane-split max.
    h1 = jnp.dot(x_ref[...], w1_ref[...], preferred_element_type=jnp.float32)
    h1 = jnp.maximum(h1 + b1_ref[...], 0.0)                   # (M, 512)
    p1 = jnp.maximum(h1[:, :256], h1[:, 256:])                 # (M, 256)

    # conv2 + bias + ReLU + MaxPool(2): one matmul; pool = aligned lane-split max.
    h2 = jnp.dot(p1.astype(jnp.bfloat16), w2_ref[...],
                 preferred_element_type=jnp.float32)
    h2 = jnp.maximum(h2 + b2_ref[...], 0.0)                    # (M, 256)
    p2 = jnp.maximum(h2[:, :128], h2[:, 128:])                 # (M, 128) lane-dense

    # flatten + fc1 + ReLU: ONE batched contraction over the 18 position-pairs
    # (nb rows x K=128 each) + a tree sum over the pair axis.  nb is a multiple
    # of 8 so the reshape is a tile-aligned no-op (no relayout, no scratch).
    p2 = p2.reshape(n_grp, nb, 128).astype(jnp.bfloat16)       # single whole-block cast
    part = jnp.einsum('gbc,gch->gbh', p2, w3_ref[...],
                      preferred_element_type=jnp.float32)      # (n_grp, nb, 128)
    acc = jnp.sum(part, axis=0)                                # (nb, 128)
    o_ref[...] = jnp.maximum(acc + fb_ref[...], 0.0).astype(o_ref.dtype)


def _convnet_pallas(xcol, p, nb):
    kernel = functools.partial(_convnet_fused_kernel, n_grp=N_GRP, nb=nb)
    # The whole problem (<1 MiB of operands) fits comfortably in VMEM: single
    # invocation, no grid (no per-step overhead), weights DMA'd exactly once.
    # NOTE: for large batches, add a row-tiled "parallel" grid axis over the
    # b dimension so DMA pipelines and v7x can split rows across its two TCs.
    return pl.pallas_call(
        kernel,
        out_shape=jax.ShapeDtypeStruct((nb, H), jnp.float32),
    )(xcol, p["w1"], p["b1"], p["w2"], p["b2"], p["w3"], p["fb"])


# ----------------------------------------------------------------------------
# Parameters: PyTorch-shaped init + one-time repack into the fused layout.
# ----------------------------------------------------------------------------
def init_params(key, input_ch):
    k1, k2, k3, k4, k5, k6 = jax.random.split(key, 6)
    return dict(
        w1=jax.random.normal(k1, (C1, input_ch, K), jnp.float32) * 0.10,  # conv1.weight
        b1=jax.random.normal(k2, (C1,), jnp.float32) * 0.10,              # conv1.bias
        w2=jax.random.normal(k3, (C2, C1, K), jnp.float32) * 0.05,        # conv2.weight
        b2=jax.random.normal(k4, (C2,), jnp.float32) * 0.05,              # conv2.bias
        fw=jax.random.normal(k5, (H, C2 * N_POS), jnp.float32) * 0.02,    # fc1.weight
        fb=jax.random.normal(k6, (H,), jnp.float32) * 0.02,               # fc1.bias
    )


def pack_params(params):
    """One-time repack (outside jit) of PyTorch-shaped params into kernel layout."""
    w1 = np.asarray(params["w1"], np.float32)     # (32, Cin, 3)
    b1 = np.asarray(params["b1"], np.float32)
    w2 = np.asarray(params["w2"], np.float32)     # (64, 32, 3)
    b2 = np.asarray(params["b2"], np.float32)
    fw = np.asarray(params["fw"], np.float32)     # (128, 64*36)
    fb = np.asarray(params["fb"], np.float32)
    c_in = w1.shape[1]

    # conv1 over the 14-row group receptive field -> 12 conv1 positions.
    # Columns: [even j (6x32) | 64 zero pad | odd j (6x32) | 64 zero pad] so the
    # pool is an aligned lane-split max at 256.
    w1full = np.zeros((RF_G * c_in, 512), np.float32)
    b1full = np.zeros((1, 512), np.float32)
    for j in range(12):                                       # conv1 position 8g + j
        col0 = (j % 2) * 256 + (j // 2) * C1
        for dk in range(K):
            rows = slice((j + dk) * c_in, (j + dk + 1) * c_in)
            w1full[rows, col0:col0 + C1] = w1[:, :, dk].T     # (c_in, 32): [c, o]
        b1full[0, col0:col0 + C1] = b1

    # conv2 over the 6 pooled positions of the group -> 4 conv2 positions.
    # Columns [s=0 | s=2 | s=1 | s=3] (even|odd), 64 wide each; pool splits at 128.
    w2big = np.zeros((256, 256), np.float32)
    for s in range(4):                                        # conv2 position 4g + s
        col0 = (s % 2) * 128 + (s // 2) * C2
        for dk in range(K):
            u = s + dk                                        # pooled sub-position
            w2big[u * C1:(u + 1) * C1, col0:col0 + C2] = w2[:, :, dk].T
    b2full = np.tile(b2, 4)[None, :]                          # (1, 256)

    # fc1 weight permuted to (q, c, h) (PyTorch view(-1, 64*36) index is c*36 + q),
    # then pairs of adjacent positions stacked onto 128 rows per group.
    w3 = fw.reshape(H, C2, N_POS).transpose(2, 1, 0)          # (36, 64, 128)
    w3 = w3.reshape(N_GRP, 2 * C2, H)                         # (18, 128, 128)

    return dict(
        w1=jnp.asarray(w1full, jnp.bfloat16),
        b1=jnp.asarray(b1full),
        w2=jnp.asarray(w2big, jnp.bfloat16),
        b2=jnp.asarray(b2full),
        w3=jnp.asarray(w3, jnp.bfloat16),
        fb=jnp.asarray(fb)[None, :],
    )


# ----------------------------------------------------------------------------
# Forward: merge branches+batch into rows, strided-slice im2col, one pallas_call.
# ----------------------------------------------------------------------------
def _im2col(xb):
    """(NB, Cin, L) -> (N_GRP*NB, RF_G*Cin) bf16, rows (group g major, b minor).

    Group g covers final positions {2g, 2g+1}; its receptive field is input
    rows [8g, 8g+14).  Built from 14 static strided slices (no XLA gather).
    """
    n_rows, c_in, _ = xb.shape
    xt = jnp.transpose(xb, (0, 2, 1))                               # (NB, L, C)
    last = 8 * (N_GRP - 1)
    cols = [xt[:, dk:dk + last + 1:8, :] for dk in range(RF_G)]     # 14 x (NB, 18, C)
    win = jnp.stack(cols, axis=2)                                   # (NB, 18, 14, C)
    win = jnp.transpose(win, (1, 0, 2, 3))                          # (18, NB, 14, C)
    return win.reshape(N_GRP * n_rows, RF_G * c_in).astype(jnp.bfloat16)


@jax.jit
def convnet_forward(packed, x, x1, x2):
    xb = jnp.concatenate([x, x1, x2], axis=0).astype(jnp.float32)   # (3B, Cin, L)
    l = xb.shape[-1]
    assert ((l - K + 1) // 2 - K + 1) // 2 == N_POS, "fc1 expects 64*36 features"
    nb = xb.shape[0]
    nbp = ((nb + 7) // 8) * 8               # pad rows to a sublane-tile multiple
    xb = jnp.pad(xb, ((0, nbp - nb), (0, 0), (0, 0)))
    xcol = _im2col(xb)                                              # (18*nbp, 14*Cin)
    out = _convnet_pallas(xcol, packed, nbp)                        # (nbp, 128)
    out = out[:nb].reshape(3, nb // 3, H)
    return out[0], out[1], out[2]


# ----------------------------------------------------------------------------
# Pure-JAX reference of the PyTorch forward (correctness check only).
# ----------------------------------------------------------------------------
def _ref_embed(params, x):
    def conv1d(h, w, b):
        y = jax.lax.conv_general_dilated(
            h, w, window_strides=(1,), padding="VALID",
            dimension_numbers=("NCH", "OIH", "NCH"))
        return y + b[None, :, None]

    def pool(h):
        n, c, l = h.shape
        return h[:, :, :(l // 2) * 2].reshape(n, c, l // 2, 2).max(axis=-1)

    h = pool(jax.nn.relu(conv1d(x, params["w1"], params["b1"])))
    h = pool(jax.nn.relu(conv1d(h, params["w2"], params["b2"])))
    feat = h.reshape(x.shape[0], -1)                                # channel-major flatten
    return jax.nn.relu(feat @ params["fw"].T + params["fb"])


if __name__ == "__main__":
    # L = 150: conv1 -> 148, pool -> 74, conv2 -> 72, pool -> 36 (matches fc1's 64*36)
    B, C_IN, L = 2, 4, 150
    key = jax.random.PRNGKey(0)
    kp, kx, kx1, kx2 = jax.random.split(key, 4)
    params = init_params(kp, C_IN)
    packed = pack_params(params)

    x = jax.random.normal(kx, (B, C_IN, L), jnp.float32)
    x1 = jax.random.normal(kx1, (B, C_IN, L), jnp.float32)
    x2 = jax.random.normal(kx2, (B, C_IN, L), jnp.float32)

    o, o1, o2 = convnet_forward(packed, x, x1, x2)
    jax.block_until_ready((o, o1, o2))
    assert o.shape == (B, H) and o1.shape == (B, H) and o2.shape == (B, H)

    # Correctness vs. the pure-JAX reference (bf16 MXU operands -> loose tol).
    for got, want in zip((o, o1, o2),
                         (_ref_embed(params, xi) for xi in (x, x1, x2))):
        np.testing.assert_allclose(np.asarray(got), np.asarray(want),
                                   rtol=2e-2, atol=2e-2)
    print("KERNEL_OK")
</pallas_src>

<mosaic_0001>
module attributes {stable_mosaic.version = 11 : i64} {
  func.func @_convnet_fused_kernel(%arg0: memref<144x56xbf16, #tpu.memory_space<vmem>>, %arg1: memref<56x512xbf16, #tpu.memory_space<vmem>>, %arg2: memref<1x512xf32, #tpu.memory_space<vmem>>, %arg3: memref<256x256xbf16, #tpu.memory_space<vmem>>, %arg4: memref<1x256xf32, #tpu.memory_space<vmem>>, %arg5: memref<18x128x128xbf16, #tpu.memory_space<vmem>>, %arg6: memref<1x128xf32, #tpu.memory_space<vmem>>, %arg7: memref<8x128xf32, #tpu.memory_space<vmem>>) attributes {dimension_semantics = [], scalar_prefetch = 0 : i64, scratch_operands = 0 : i64, tpu.core_type = #tpu.core_type<tc>} {
    %c0 = arith.constant 0 : index
    %c0_0 = arith.constant 0 : index
    %0 = vector.load %arg0[%c0, %c0_0] : memref<144x56xbf16, #tpu.memory_space<vmem>>, vector<144x56xbf16>
    %c0_1 = arith.constant 0 : index
    %c0_2 = arith.constant 0 : index
    %1 = vector.load %arg1[%c0_1, %c0_2] : memref<56x512xbf16, #tpu.memory_space<vmem>>, vector<56x512xbf16>
    %cst = arith.constant dense<0.000000e+00> : vector<144x512xf32>
    %2 = tpu.matmul %0, %1, %cst {dimension_numbers = #tpu.dot_dimension_numbers<[1], [0], [0], [1], [0, 0, 1, 1], [], []>} : vector<144x56xbf16>, vector<56x512xbf16>, vector<144x512xf32> -> vector<144x512xf32>
    %c0_3 = arith.constant 0 : index
    %c0_4 = arith.constant 0 : index
    %3 = vector.load %arg2[%c0_3, %c0_4] : memref<1x512xf32, #tpu.memory_space<vmem>>, vector<1x512xf32>
    %4 = vector.broadcast %3 : vector<1x512xf32> to vector<144x512xf32>
    %5 = arith.addf %2, %4 : vector<144x512xf32>
    %cst_5 = arith.constant 0.000000e+00 : f32
    %6 = vector.broadcast %cst_5 : f32 to vector<144x512xf32>
    %7 = arith.maximumf %5, %6 : vector<144x512xf32>
    %8 = vector.extract_strided_slice %7 {offsets = [0, 0], sizes = [144, 256], strides = [1, 1]} : vector<144x512xf32> to vector<144x256xf32>
    %9 = vector.extract_strided_slice %7 {offsets = [0, 256], sizes = [144, 256], strides = [1, 1]} : vector<144x512xf32> to vector<144x256xf32>
    %10 = arith.maximumf %8, %9 : vector<144x256xf32>
    %11 = arith.truncf %10 : vector<144x256xf32> to vector<144x256xbf16>
    %c0_6 = arith.constant 0 : index
    %c0_7 = arith.constant 0 : index
    %12 = vector.load %arg3[%c0_6, %c0_7] : memref<256x256xbf16, #tpu.memory_space<vmem>>, vector<256x256xbf16>
    %cst_8 = arith.constant dense<0.000000e+00> : vector<144x256xf32>
    %13 = tpu.matmul %11, %12, %cst_8 {dimension_numbers = #tpu.dot_dimension_numbers<[1], [0], [0], [1], [0, 0, 1, 1], [], []>} : vector<144x256xbf16>, vector<256x256xbf16>, vector<144x256xf32> -> vector<144x256xf32>
    %c0_9 = arith.constant 0 : index
    %c0_10 = arith.constant 0 : index
    %14 = vector.load %arg4[%c0_9, %c0_10] : memref<1x256xf32, #tpu.memory_space<vmem>>, vector<1x256xf32>
    %15 = vector.broadcast %14 : vector<1x256xf32> to vector<144x256xf32>
    %16 = arith.addf %13, %15 : vector<144x256xf32>
    %cst_11 = arith.constant 0.000000e+00 : f32
    %17 = vector.broadcast %cst_11 : f32 to vector<144x256xf32>
    %18 = arith.maximumf %16, %17 : vector<144x256xf32>
    %19 = vector.extract_strided_slice %18 {offsets = [0, 0], sizes = [144, 128], strides = [1, 1]} : vector<144x256xf32> to vector<144x128xf32>
    %20 = vector.extract_strided_slice %18 {offsets = [0, 128], sizes = [144, 128], strides = [1, 1]} : vector<144x256xf32> to vector<144x128xf32>
    %21 = arith.maximumf %19, %20 : vector<144x128xf32>
    %22 = vector.shape_cast %21 : vector<144x128xf32> to vector<18x8x128xf32>
    %23 = arith.truncf %22 : vector<18x8x128xf32> to vector<18x8x128xbf16>
    %c0_12 = arith.constant 0 : index
    %c0_13 = arith.constant 0 : index
    %c0_14 = arith.constant 0 : index
    %24 = vector.load %arg5[%c0_12, %c0_13, %c0_14] : memref<18x128x128xbf16, #tpu.memory_space<vmem>>, vector<18x128x128xbf16>
    "tpu.trace_start"() <{level = 10 : i32, message = "gbc,gch->gbh"}> : () -> ()
    %cst_15 = arith.constant dense<0.000000e+00> : vector<18x8x128xf32>
    %25 = tpu.matmul %23, %24, %cst_15 {dimension_numbers = #tpu.dot_dimension_numbers<[2], [1], [1], [2], [0, 0, 0, 1, 1, 2], [0], [0]>} : vector<18x8x128xbf16>, vector<18x128x128xbf16>, vector<18x8x128xf32> -> vector<18x8x128xf32>
    "tpu.trace_stop"() : () -> ()
    %cst_16 = arith.constant dense<0.000000e+00> : vector<8x128xf32>
    %26 = vector.multi_reduction <add>, %25, %cst_16 [0] : vector<18x8x128xf32> to vector<8x128xf32>
    %c0_17 = arith.constant 0 : index
    %c0_18 = arith.constant 0 : index
    %27 = vector.load %arg6[%c0_17, %c0_18] : memref<1x128xf32, #tpu.memory_space<vmem>>, vector<1x128xf32>
    %28 = vector.broadcast %27 : vector<1x128xf32> to vector<8x128xf32>
    %29 = arith.addf %26, %28 : vector<8x128xf32>
    %cst_19 = arith.constant 0.000000e+00 : f32
    %30 = vector.broadcast %cst_19 : f32 to vector<8x128xf32>
    %31 = arith.maximumf %29, %30 : vector<8x128xf32>
    %c0_20 = arith.constant 0 : index
    %c0_21 = arith.constant 0 : index
    %32 = vector.load %arg7[%c0_20, %c0_21] : memref<8x128xf32, #tpu.memory_space<vmem>>, vector<8x128xf32>
    tpu.vector_store %arg7[%c0_20, %c0_21], %31 {strides = array<i32>} : memref<8x128xf32, #tpu.memory_space<vmem>>, vector<8x128xf32>,
    return
  }
}

</mosaic_0001>

<llo_original>
// kernel: convnet_forward.1
$region0: #{convnet_forward.1}
  #allocation0 [shape = 'u32[]', space=smem, size = 0x4, offset = 0x4, fixed_abs, tag = 'smem constant byte address 0x4 - core index']
  #allocation1 [shape = 'u32[144,128]{1,0:T(1,128)}', space=vmem, size = 0x12000, scoped, tag = 'internal scratch']
  %s0 = inlined_call_operand.vmem [shape: bf16[144,56], index: 0, kind: input, shape index: {}]
  %s1 = inlined_call_operand.vmem [shape: bf16[56,512], index: 1, kind: input, shape index: {}]
  %s2 = inlined_call_operand.vmem [shape: f32[1,512], index: 2, kind: input, shape index: {}]
  %s3 = inlined_call_operand.vmem [shape: bf16[256,256], index: 3, kind: input, shape index: {}]
  %s4 = inlined_call_operand.vmem [shape: f32[1,256], index: 4, kind: input, shape index: {}]
  %s5 = inlined_call_operand.vmem [shape: bf16[18,128,128], index: 5, kind: input, shape index: {}]
  %s6 = inlined_call_operand.vmem [shape: f32[1,128], index: 6, kind: input, shape index: {}]
  %s7 = inlined_call_operand.vmem [shape: f32[8,128], index: 7, kind: output, shape index: {}]
  %s8 = sld [smem:[#allocation0]]
  $region38: #{convnet_forward.1} parent=0
    _
  %s10 = ssub.s32 1, %s8
  %s11 = scalar_select 0, %s10, %s8
  // Predicated region
  $region2: #{convnet_forward.1} parent=0 // pred_check
    _
  $region3: #{convnet_forward.1} parent=0 // pred_check_branch
    %13 = sbr.rel (0) target = $region5
  $region4: #{convnet_forward.1} parent=0 // pred_region
    _
  $region5: #{convnet_forward.1} parent=0 // pred_fallthru
    _
  // Predicated region
  $region6: #{convnet_forward.1} parent=0 // pred_check
    _
  $region7: #{convnet_forward.1} parent=0 // pred_check_branch
    %15 = sbr.rel (0) target = $region9
  $region8: #{convnet_forward.1} parent=0 // pred_region
    _
  $region9: #{convnet_forward.1} parent=0 // pred_fallthru
    _
  // Predicated region
  $region10: #{convnet_forward.1} parent=0 // pred_check
    _
  $region11: #{convnet_forward.1} parent=0 // pred_check_branch
    %17 = sbr.rel (0) target = $region13
  $region12: #{convnet_forward.1} parent=0 // pred_region
    _
  $region13: #{convnet_forward.1} parent=0 // pred_fallthru
    _
  // Predicated region
  $region14: #{convnet_forward.1} parent=0 // pred_check
    _
  $region15: #{convnet_forward.1} parent=0 // pred_check_branch
    %19 = sbr.rel (0) target = $region17
  $region16: #{convnet_forward.1} parent=0 // pred_region
    _
  $region17: #{convnet_forward.1} parent=0 // pred_fallthru
    _
  // Predicated region
  $region18: #{convnet_forward.1} parent=0 // pred_check
    _
  $region19: #{convnet_forward.1} parent=0 // pred_check_branch
    %21 = sbr.rel (0) target = $region21
  $region20: #{convnet_forward.1} parent=0 // pred_region
    _
  $region21: #{convnet_forward.1} parent=0 // pred_fallthru
    _
  // Predicated region
  $region22: #{convnet_forward.1} parent=0 // pred_check
    _
  $region23: #{convnet_forward.1} parent=0 // pred_check_branch
    %23 = sbr.rel (0) target = $region25
  $region24: #{convnet_forward.1} parent=0 // pred_region
    _
  $region25: #{convnet_forward.1} parent=0 // pred_fallthru
    _
  // Predicated region
  $region26: #{convnet_forward.1} parent=0 // pred_check
    _
  $region27: #{convnet_forward.1} parent=0 // pred_check_branch
    %25 = sbr.rel (0) target = $region29
  $region28: #{convnet_forward.1} parent=0 // pred_region
    _
  $region29: #{convnet_forward.1} parent=0 // pred_fallthru
    _
  %v27 = vld [vmem:[%s0] sm:$0xf]
  %v28 = vld [vmem:[%s0 + $0x4] sm:$0xf]
  %v29 = vld [vmem:[%s0 + $0x8] sm:$0xf]
  %v30 = vld [vmem:[%s0 + $0xc] sm:$0xf]
  %v31 = vld [vmem:[%s0 + $0x10] sm:$0xf]
  %v32 = vld [vmem:[%s0 + $0x14] sm:$0xf]
  %v33 = vld [vmem:[%s0 + $0x18] sm:$0xf]
  %v34 = vld [vmem:[%s0 + $0x1c] sm:$0xf]
  %v35 = vld [vmem:[%s0 + $0x20] sm:$0xf]
  %v36 = vld [vmem:[%s0 + $0x24] sm:$0xf]
  %v37 = vld [vmem:[%s0 + $0x28] sm:$0xf]
  %v38 = vld [vmem:[%s0 + $0x2c] sm:$0xf]
  %v39 = vld [vmem:[%s0 + $0x30] sm:$0xf]
  %v40 = vld [vmem:[%s0 + $0x34] sm:$0xf]
  %v41 = vld [vmem:[%s0 + $0x38] sm:$0xf]
  %v42 = vld [vmem:[%s0 + $0x3c] sm:$0xf]
  %v43 = vld [vmem:[%s0 + $0x40] sm:$0xf]
  %v44 = vld [vmem:[%s0 + $0x44] sm:$0xf]
  %v45 = vld [vmem:[%s1] sm:$0xff]
  %v46 = vld [vmem:[%s1 + $0x8] sm:$0xff]
  %v47 = vld [vmem:[%s1 + $0x10] sm:$0xff]
  %v48 = vld [vmem:[%s1 + $0x18] sm:$0xff]
  %v49 = vld [vmem:[%s1 + $0x20] sm:$0xff]
  %v50 = vld [vmem:[%s1 + $0x28] sm:$0xff]
  %v51 = vld [vmem:[%s1 + $0x30] sm:$0xff]
  %v52 = vld [vmem:[%s1 + $0x38] sm:$0xff]
  %v53 = vld [vmem:[%s1 + $0x40] sm:$0xff]
  %v54 = vld [vmem:[%s1 + $0x48] sm:$0xff]
  %v55 = vld [vmem:[%s1 + $0x50] sm:$0xff]
  %v56 = vld [vmem:[%s1 + $0x58] sm:$0xff]
  %v57 = vld [vmem:[%s1 + $0x60] sm:$0xff]
  %v58 = vld [vmem:[%s1 + $0x68] sm:$0xff]
  %v59 = vld [vmem:[%s2] sm:$0xf]
  %v61 = vlaneseq
  %v62 = vshrl.u32 %v61, 7
  %v63 = vsub.s32 0, %v62
  %v64 = vrot.slane %v59, %v63
  %v65 = vlaneseq
  %v66 = vshrl.u32 %v65, 7
  %v67 = vsub.s32 1, %v66
  %v68 = vrot.slane %v59, %v67
  %v69 = vlaneseq
  %v70 = vshrl.u32 %v69, 7
  %v71 = vsub.s32 2, %v70
  %v72 = vrot.slane %v59, %v71
  %v73 = vlaneseq
  %v74 = vshrl.u32 %v73, 7
  %v75 = vsub.s32 3, %v74
  %v76 = vrot.slane %v59, %v75
  %v99 = vunpack.c.l.b16 %v27
  %v100 = vunpack.c.l.b16 %v28
  %v101 = vunpack.c.l.b16 %v29
  %v102 = vunpack.c.l.b16 %v30
  %v103 = vunpack.c.l.b16 %v31
  %v104 = vunpack.c.l.b16 %v32
  %v105 = vunpack.c.l.b16 %v33
  %v106 = vunpack.c.l.b16 %v34
  %v107 = vunpack.c.l.b16 %v35
  %v108 = vunpack.c.l.b16 %v36
  %v109 = vunpack.c.l.b16 %v37
  %v110 = vunpack.c.l.b16 %v38
  %v111 = vunpack.c.l.b16 %v39
  %v112 = vunpack.c.l.b16 %v40
  %v113 = vunpack.c.l.b16 %v41
  %v114 = vunpack.c.l.b16 %v42
  %v115 = vunpack.c.l.b16 %v43
  %v116 = vunpack.c.l.b16 %v44
  %v117 = vpack.c.b16 %v100, %v99
  %v118 = vpack.c.b16 %v102, %v101
  %v119 = vpack.c.b16 %v104, %v103
  %v120 = vpack.c.b16 %v106, %v105
  %v121 = vpack.c.b16 %v108, %v107
  %v122 = vpack.c.b16 %v110, %v109
  %v123 = vpack.c.b16 %v112, %v111
  %v124 = vpack.c.b16 %v114, %v113
  %v125 = vpack.c.b16 %v116, %v115
  %v140 = vunpack.c.l.b16 %v45
  %v141 = vunpack.c.h.b16 %v45
  %v142 = vunpack.c.l.b16 %v46
  %v143 = vunpack.c.h.b16 %v46
  %v144 = vunpack.c.l.b16 %v47
  %v145 = vunpack.c.h.b16 %v47
  %v146 = vunpack.c.l.b16 %v48
  %v147 = vunpack.c.h.b16 %v48
  %v148 = vunpack.c.l.b16 %v49
  %v149 = vunpack.c.h.b16 %v49
  %v150 = vunpack.c.l.b16 %v50
  %v151 = vunpack.c.h.b16 %v50
  %v152 = vunpack.c.l.b16 %v51
  %v153 = vunpack.c.h.b16 %v51
  %v154 = vunpack.c.l.b16 %v52
  %v155 = vunpack.c.h.b16 %v52
  %v156 = vunpack.c.l.b16 %v53
  %v157 = vunpack.c.h.b16 %v53
  %v158 = vunpack.c.l.b16 %v54
  %v159 = vunpack.c.h.b16 %v54
  %v160 = vunpack.c.l.b16 %v55
  %v161 = vunpack.c.h.b16 %v55
  %v162 = vunpack.c.l.b16 %v56
  %v163 = vunpack.c.h.b16 %v56
  %v164 = vunpack.c.l.b16 %v57
  %v165 = vunpack.c.h.b16 %v57
  %v166 = vunpack.c.l.b16 %v58
  %v167 = vunpack.c.h.b16 %v58
  %v168 = vpack.c.b16 %v144, %v140
  %v169 = vpack.c.b16 %v145, %v141
  %v170 = vpack.c.b16 %v146, %v142
  %v171 = vpack.c.b16 %v147, %v143
  %v172 = vpack.c.b16 %v152, %v148
  %v173 = vpack.c.b16 %v153, %v149
  %v174 = vpack.c.b16 %v154, %v150
  %v175 = vpack.c.b16 %v155, %v151
  %v176 = vpack.c.b16 %v160, %v156
  %v177 = vpack.c.b16 %v161, %v157
  %v178 = vpack.c.b16 %v162, %v158
  %v179 = vpack.c.b16 %v163, %v159
  %v180 = vpack.c.b16 %v164, %v164
  %v181 = vpack.c.b16 %v165, %v165
  %v182 = vpack.c.b16 %v166, %v166
  %v183 = vpack.c.b16 %v167, %v167
  %vm196 = vcmask 457728
  %v198 = vsel %vm196, %v117, 0
  %v201 = vsel %vm196, %v118, 0
  %v204 = vsel %vm196, %v119, 0
  %v207 = vsel %vm196, %v120, 0
  %v210 = vsel %vm196, %v121, 0
  %v213 = vsel %vm196, %v122, 0
  %v216 = vsel %vm196, %v123, 0
  %v219 = vsel %vm196, %v124, 0
  %v222 = vsel %vm196, %v125, 0
  %vm224 = vcmask 1043456
  %v226 = vsel %vm224, %v180, 0
  %v229 = vsel %vm224, %v181, 0
  %v232 = vsel %vm224, %v182, 0
  %v235 = vsel %vm224, %v183, 0
  %237 = vmatprep.subr.bf16.mxu0 %v169
  %238 = vmatpush1.bf16.msra.mxu0 %v168
  %239 = vmatprep.subr.bf16.mxu0 %v173
  %240 = vmatpush1.bf16.msra.mxu0 %v172
  %241 = vmatprep.subr.bf16.mxu0 %v177
  %242 = vmatpush1.bf16.msra.mxu0 %v176
  %243 = vmatprep.subr.bf16.mxu0 %v229
  %244 = vmatpush1.bf16.msra.mxu0 %v226
  %245 = vmatprep.subr.bf16.mxu0 0
  %246 = vmatpush1.bf16.msra.mxu0 0
  %247 = vmatprep.subr.bf16.mxu0 0
  %248 = vmatpush1.bf16.msra.mxu0 0
  %249 = vmatprep.subr.bf16.mxu0 0
  %250 = vmatpush1.bf16.msra.mxu0 0
  %251 = vmatprep.subr.bf16.mxu0 0
  %252 = vmatpush1.bf16.msra.mxu0 0
  %253 = vmatprep.subr.bf16.mxu0 0
  %254 = vmatpush1.bf16.msra.mxu0 0
  %255 = vmatprep.subr.bf16.mxu0 0
  %256 = vmatpush1.bf16.msra.mxu0 0
  %257 = vmatprep.subr.bf16.mxu0 0
  %258 = vmatpush1.bf16.msra.mxu0 0
  %259 = vmatprep.subr.bf16.mxu0 0
  %260 = vmatpush1.bf16.msra.mxu0 0
  %261 = vmatprep.subr.bf16.mxu0 0
  %262 = vmatpush1.bf16.msra.mxu0 0
  %263 = vmatprep.subr.bf16.mxu0 0
  %264 = vmatpush1.bf16.msra.mxu0 0
  %265 = vmatprep.subr.bf16.mxu0 0
  %266 = vmatpush1.bf16.msra.mxu0 0
  %267 = vmatprep.subr.bf16.mxu0 0
  %268 = vmatpush1.bf16.msra.mxu0 0
  %269 = vmatprep.mubr.bf16.mxu0 0
  %270 = vmatmul.mubr.bf16.gmra.mrb[0].mxu0 %v198
  %v271 = vpop.f32.mrb[0].mxu0
  %v272 = vadd.f32 %v64, %v271
  %v273 = vpop.f32.mrb[0].mxu0
  %v274 = vadd.f32 %v68, %v273
  %v275 = vpop.f32.mrb[0].mxu0
  %v276 = vadd.f32 %v64, %v275
  %v277 = vpop.f32.mrb[0].mxu0
  %v278 = vadd.f32 %v68, %v277
  %279 = vmatprep.mubr.bf16.mxu0 0
  %280 = vmatmul.mubr.bf16.gmra.mrb[0].mxu0 %v201
  %v281 = vpop.f32.mrb[0].mxu0
  %v282 = vadd.f32 %v64, %v281
  %v283 = vpop.f32.mrb[0].mxu0
  %v284 = vadd.f32 %v68, %v283
  %v285 = vpop.f32.mrb[0].mxu0
  %v286 = vadd.f32 %v64, %v285
  %v287 = vpop.f32.mrb[0].mxu0
  %v288 = vadd.f32 %v68, %v287
  %289 = vmatprep.mubr.bf16.mxu0 0
  %290 = vmatmul.mubr.bf16.gmra.mrb[0].mxu0 %v204
  %v291 = vpop.f32.mrb[0].mxu0
  %v292 = vadd.f32 %v64, %v291
  %v293 = vpop.f32.mrb[0].mxu0
  %v294 = vadd.f32 %v68, %v293
  %v295 = vpop.f32.mrb[0].mxu0
  %v296 = vadd.f32 %v64, %v295
  %v297 = vpop.f32.mrb[0].mxu0
  %v298 = vadd.f32 %v68, %v297
  %299 = vmatprep.mubr.bf16.mxu0 0
  %300 = vmatmul.mubr.bf16.gmra.mrb[0].mxu0 %v207
  %v301 = vpop.f32.mrb[0].mxu0
  %v302 = vadd.f32 %v64, %v301
  %v303 = vpop.f32.mrb[0].mxu0
  %v304 = vadd.f32 %v68, %v303
  %v305 = vpop.f32.mrb[0].mxu0
  %v306 = vadd.f32 %v64, %v305
  %v307 = vpop.f32.mrb[0].mxu0
  %v308 = vadd.f32 %v68, %v307
  %309 = vmatprep.mubr.bf16.mxu0 0
  %310 = vmatmul.mubr.bf16.gmra.mrb[0].mxu0 %v210
  %v311 = vpop.f32.mrb[0].mxu0
  %v312 = vadd.f32 %v64, %v311
  %v313 = vpop.f32.mrb[0].mxu0
  %v314 = vadd.f32 %v68, %v313
  %v315 = vpop.f32.mrb[0].mxu0
  %v316 = vadd.f32 %v64, %v315
  %v317 = vpop.f32.mrb[0].mxu0
  %v318 = vadd.f32 %v68, %v317
  %319 = vmatprep.mubr.bf16.mxu0 0
  %320 = vmatmul.mubr.bf16.gmra.mrb[0].mxu0 %v213
  %v321 = vpop.f32.mrb[0].mxu0
  %v322 = vadd.f32 %v64, %v321
  %v323 = vpop.f32.mrb[0].mxu0
  %v324 = vadd.f32 %v68, %v323
  %v325 = vpop.f32.mrb[0].mxu0
  %v326 = vadd.f32 %v64, %v325
  %v327 = vpop.f32.mrb[0].mxu0
  %v328 = vadd.f32 %v68, %v327
  %329 = vmatprep.mubr.bf16.mxu0 0
  %330 = vmatmul.mubr.bf16.gmra.mrb[0].mxu0 %v216
  %v331 = vpop.f32.mrb[0].mxu0
  %v332 = vadd.f32 %v64, %v331
  %v333 = vpop.f32.mrb[0].mxu0
  %v334 = vadd.f32 %v68, %v333
  %v335 = vpop.f32.mrb[0].mxu0
  %v336 = vadd.f32 %v64, %v335
  %v337 = vpop.f32.mrb[0].mxu0
  %v338 = vadd.f32 %v68, %v337
  %339 = vmatprep.mubr.bf16.mxu0 0
  %340 = vmatmul.mubr.bf16.gmra.mrb[0].mxu0 %v219
  %v341 = vpop.f32.mrb[0].mxu0
  %v342 = vadd.f32 %v64, %v341
  %v343 = vpop.f32.mrb[0].mxu0
  %v344 = vadd.f32 %v68, %v343
  %v345 = vpop.f32.mrb[0].mxu0
  %v346 = vadd.f32 %v64, %v345
  %v347 = vpop.f32.mrb[0].mxu0
  %v348 = vadd.f32 %v68, %v347
  %349 = vmatprep.mubr.bf16.mxu0 0
  %350 = vmatmul.mubr.bf16.gmra.mrb[0].mxu0 %v222
  %v351 = vpop.f32.mrb[0].mxu0
  %v352 = vadd.f32 %v64, %v351
  %v353 = vpop.f32.mrb[0].mxu0
  %v354 = vadd.f32 %v68, %v353
  %v355 = vpop.f32.mrb[0].mxu0
  %v356 = vadd.f32 %v64, %v355
  %v357 = vpop.f32.mrb[0].mxu0
  %v358 = vadd.f32 %v68, %v357
  %359 = vdwg.mxu0
  %360 = vmatprep.subr.bf16.mxu0 %v171
  %361 = vmatpush1.bf16.msra.mxu0 %v170
  %362 = vmatprep.subr.bf16.mxu0 %v175
  %363 = vmatpush1.bf16.msra.mxu0 %v174
  %364 = vmatprep.subr.bf16.mxu0 %v179
  %365 = vmatpush1.bf16.msra.mxu0 %v178
  %366 = vmatprep.subr.bf16.mxu0 %v235
  %367 = vmatpush1.bf16.msra.mxu0 %v232
  %368 = vmatprep.subr.bf16.mxu0 0
  %369 = vmatpush1.bf16.msra.mxu0 0
  %370 = vmatprep.subr.bf16.mxu0 0
  %371 = vmatpush1.bf16.msra.mxu0 0
  %372 = vmatprep.subr.bf16.mxu0 0
  %373 = vmatpush1.bf16.msra.mxu0 0
  %374 = vmatprep.subr.bf16.mxu0 0
  %375 = vmatpush1.bf16.msra.mxu0 0
  %376 = vmatprep.subr.bf16.mxu0 0
  %377 = vmatpush1.bf16.msra.mxu0 0
  %378 = vmatprep.subr.bf16.mxu0 0
  %379 = vmatpush1.bf16.msra.mxu0 0
  %380 = vmatprep.subr.bf16.mxu0 0
  %381 = vmatpush1.bf16.msra.mxu0 0
  %382 = vmatprep.subr.bf16.mxu0 0
  %383 = vmatpush1.bf16.msra.mxu0 0
  %384 = vmatprep.subr.bf16.mxu0 0
  %385 = vmatpush1.bf16.msra.mxu0 0
  %386 = vmatprep.subr.bf16.mxu0 0
  %387 = vmatpush1.bf16.msra.mxu0 0
  %388 = vmatprep.subr.bf16.mxu0 0
  %389 = vmatpush1.bf16.msra.mxu0 0
  %390 = vmatprep.subr.bf16.mxu0 0
  %391 = vmatpush1.bf16.msra.mxu0 0
  %392 = vmatprep.mubr.bf16.mxu0 0
  %393 = vmatmul.mubr.bf16.gmra.mrb[0].mxu0 %v198
  %v394 = vpop.f32.mrb[0].mxu0
  %v395 = vadd.f32 %v72, %v394
  %v396 = vpop.f32.mrb[0].mxu0
  %v397 = vadd.f32 %v76, %v396
  %v398 = vpop.f32.mrb[0].mxu0
  %v399 = vadd.f32 %v72, %v398
  %v400 = vpop.f32.mrb[0].mxu0
  %v401 = vadd.f32 %v76, %v400
  %402 = vmatprep.mubr.bf16.mxu0 0
  %403 = vmatmul.mubr.bf16.gmra.mrb[0].mxu0 %v201
  %v404 = vpop.f32.mrb[0].mxu0
  %v405 = vadd.f32 %v72, %v404
  %v406 = vpop.f32.mrb[0].mxu0
  %v407 = vadd.f32 %v76, %v406
  %v408 = vpop.f32.mrb[0].mxu0
  %v409 = vadd.f32 %v72, %v408
  %v410 = vpop.f32.mrb[0].mxu0
  %v411 = vadd.f32 %v76, %v410
  %412 = vmatprep.mubr.bf16.mxu0 0
  %413 = vmatmul.mubr.bf16.gmra.mrb[0].mxu0 %v204
  %v414 = vpop.f32.mrb[0].mxu0
  %v415 = vadd.f32 %v72, %v414
  %v416 = vpop.f32.mrb[0].mxu0
  %v417 = vadd.f32 %v76, %v416
  %v418 = vpop.f32.mrb[0].mxu0
  %v419 = vadd.f32 %v72, %v418
  %v420 = vpop.f32.mrb[0].mxu0
  %v421 = vadd.f32 %v76, %v420
  %422 = vmatprep.mubr.bf16.mxu0 0
  %423 = vmatmul.mubr.bf16.gmra.mrb[0].mxu0 %v207
  %v424 = vpop.f32.mrb[0].mxu0
  %v425 = vadd.f32 %v72, %v424
  %v426 = vpop.f32.mrb[0].mxu0
  %v427 = vadd.f32 %v76, %v426
  %v428 = vpop.f32.mrb[0].mxu0
  %v429 = vadd.f32 %v72, %v428
  %v430 = vpop.f32.mrb[0].mxu0
  %v431 = vadd.f32 %v76, %v430
  %432 = vmatprep.mubr.bf16.mxu0 0
  %433 = vmatmul.mubr.bf16.gmra.mrb[0].mxu0 %v210
  %v434 = vpop.f32.mrb[0].mxu0
  %v435 = vadd.f32 %v72, %v434
  %v436 = vpop.f32.mrb[0].mxu0
  %v437 = vadd.f32 %v76, %v436
  %v438 = vpop.f32.mrb[0].mxu0
  %v439 = vadd.f32 %v72, %v438
  %v440 = vpop.f32.mrb[0].mxu0
  %v441 = vadd.f32 %v76, %v440
  %442 = vmatprep.mubr.bf16.mxu0 0
  %443 = vmatmul.mubr.bf16.gmra.mrb[0].mxu0 %v213
  %v444 = vpop.f32.mrb[0].mxu0
  %v445 = vadd.f32 %v72, %v444
  %v446 = vpop.f32.mrb[0].mxu0
  %v447 = vadd.f32 %v76, %v446
  %v448 = vpop.f32.mrb[0].mxu0
  %v449 = vadd.f32 %v72, %v448
  %v450 = vpop.f32.mrb[0].mxu0
  %v451 = vadd.f32 %v76, %v450
  %452 = vmatprep.mubr.bf16.mxu0 0
  %453 = vmatmul.mubr.bf16.gmra.mrb[0].mxu0 %v216
  %v454 = vpop.f32.mrb[0].mxu0
  %v455 = vadd.f32 %v72, %v454
  %v456 = vpop.f32.mrb[0].mxu0
  %v457 = vadd.f32 %v76, %v456
  %v458 = vpop.f32.mrb[0].mxu0
  %v459 = vadd.f32 %v72, %v458
  %v460 = vpop.f32.mrb[0].mxu0
  %v461 = vadd.f32 %v76, %v460
  %462 = vmatprep.mubr.bf16.mxu0 0
  %463 = vmatmul.mubr.bf16.gmra.mrb[0].mxu0 %v219
  %v464 = vpop.f32.mrb[0].mxu0
  %v465 = vadd.f32 %v72, %v464
  %v466 = vpop.f32.mrb[0].mxu0
  %v467 = vadd.f32 %v76, %v466
  %v468 = vpop.f32.mrb[0].mxu0
  %v469 = vadd.f32 %v72, %v468
  %v470 = vpop.f32.mrb[0].mxu0
  %v471 = vadd.f32 %v76, %v470
  %472 = vmatprep.mubr.bf16.mxu0 0
  %473 = vmatmul.mubr.bf16.gmra.mrb[0].mxu0 %v222
  %v474 = vpop.f32.mrb[0].mxu0
  %v475 = vadd.f32 %v72, %v474
  %v476 = vpop.f32.mrb[0].mxu0
  %v477 = vadd.f32 %v76, %v476
  %v478 = vpop.f32.mrb[0].mxu0
  %v479 = vadd.f32 %v72, %v478
  %v480 = vpop.f32.mrb[0].mxu0
  %v481 = vadd.f32 %v76, %v480
  %482 = vdwg.mxu0
  %v483 = vmax.f32 %v272, 0.0
  %v484 = vmax.f32 %v274, 0.0
  %v485 = vmax.f32 %v395, 0.0
  %v486 = vmax.f32 %v397, 0.0
  %v487 = vmax.f32 %v276, 0.0
  %v488 = vmax.f32 %v278, 0.0
  %v489 = vmax.f32 %v399, 0.0
  %v490 = vmax.f32 %v401, 0.0
  %v491 = vmax.f32 %v282, 0.0
  %v492 = vmax.f32 %v284, 0.0
  %v493 = vmax.f32 %v405, 0.0
  %v494 = vmax.f32 %v407, 0.0
  %v495 = vmax.f32 %v286, 0.0
  %v496 = vmax.f32 %v288, 0.0
  %v497 = vmax.f32 %v409, 0.0
  %v498 = vmax.f32 %v411, 0.0
  %v499 = vmax.f32 %v292, 0.0
  %v500 = vmax.f32 %v294, 0.0
  %v501 = vmax.f32 %v415, 0.0
  %v502 = vmax.f32 %v417, 0.0
  %v503 = vmax.f32 %v296, 0.0
  %v504 = vmax.f32 %v298, 0.0
  %v505 = vmax.f32 %v419, 0.0
  %v506 = vmax.f32 %v421, 0.0
  %v507 = vmax.f32 %v302, 0.0
  %v508 = vmax.f32 %v304, 0.0
  %v509 = vmax.f32 %v425, 0.0
  %v510 = vmax.f32 %v427, 0.0
  %v511 = vmax.f32 %v306, 0.0
  %v512 = vmax.f32 %v308, 0.0
  %v513 = vmax.f32 %v429, 0.0
  %v514 = vmax.f32 %v431, 0.0
  %v515 = vmax.f32 %v312, 0.0
  %v516 = vmax.f32 %v314, 0.0
  %v517 = vmax.f32 %v435, 0.0
  %v518 = vmax.f32 %v437, 0.0
  %v519 = vmax.f32 %v316, 0.0
  %v520 = vmax.f32 %v318, 0.0
  %v521 = vmax.f32 %v439, 0.0
  %v522 = vmax.f32 %v441, 0.0
  %v523 = vmax.f32 %v322, 0.0
  %v524 = vmax.f32 %v324, 0.0
  %v525 = vmax.f32 %v445, 0.0
  %v526 = vmax.f32 %v447, 0.0
  %v527 = vmax.f32 %v326, 0.0
  %v528 = vmax.f32 %v328, 0.0
  %v529 = vmax.f32 %v449, 0.0
  %v530 = vmax.f32 %v451, 0.0
  %v531 = vmax.f32 %v332, 0.0
  %v532 = vmax.f32 %v334, 0.0
  %v533 = vmax.f32 %v455, 0.0
  %v534 = vmax.f32 %v457, 0.0
  %v535 = vmax.f32 %v336, 0.0
  %v536 = vmax.f32 %v338, 0.0
  %v537 = vmax.f32 %v459, 0.0
  %v538 = vmax.f32 %v461, 0.0
  %v539 = vmax.f32 %v342, 0.0
  %v540 = vmax.f32 %v344, 0.0
  %v541 = vmax.f32 %v465, 0.0
  %v542 = vmax.f32 %v467, 0.0
  %v543 = vmax.f32 %v346, 0.0
  %v544 = vmax.f32 %v348, 0.0
  %v545 = vmax.f32 %v469, 0.0
  %v546 = vmax.f32 %v471, 0.0
  %v547 = vmax.f32 %v352, 0.0
  %v548 = vmax.f32 %v354, 0.0
  %v549 = vmax.f32 %v475, 0.0
  %v550 = vmax.f32 %v477, 0.0
  %v551 = vmax.f32 %v356, 0.0
  %v552 = vmax.f32 %v358, 0.0
  %v553 = vmax.f32 %v479, 0.0
  %v554 = vmax.f32 %v481, 0.0
  %v555 = vmax.f32 %v483, %v485
  %v556 = vmax.f32 %v484, %v486
  %v557 = vmax.f32 %v487, %v489
  %v558 = vmax.f32 %v488, %v490
  %v559 = vmax.f32 %v491, %v493
  %v560 = vmax.f32 %v492, %v494
  %v561 = vmax.f32 %v495, %v497
  %v562 = vmax.f32 %v496, %v498
  %v563 = vmax.f32 %v499, %v501
  %v564 = vmax.f32 %v500, %v502
  %v565 = vmax.f32 %v503, %v505
  %v566 = vmax.f32 %v504, %v506
  %v567 = vmax.f32 %v507, %v509
  %v568 = vmax.f32 %v508, %v510
  %v569 = vmax.f32 %v511, %v513
  %v570 = vmax.f32 %v512, %v514
  %v571 = vmax.f32 %v515, %v517
  %v572 = vmax.f32 %v516, %v518
  %v573 = vmax.f32 %v519, %v521
  %v574 = vmax.f32 %v520, %v522
  %v575 = vmax.f32 %v523, %v525
  %v576 = vmax.f32 %v524, %v526
  %v577 = vmax.f32 %v527, %v529
  %v578 = vmax.f32 %v528, %v530
  %v579 = vmax.f32 %v531, %v533
  %v580 = vmax.f32 %v532, %v534
  %v581 = vmax.f32 %v535, %v537
  %v582 = vmax.f32 %v536, %v538
  %v583 = vmax.f32 %v539, %v541
  %v584 = vmax.f32 %v540, %v542
  %v585 = vmax.f32 %v543, %v545
  %v586 = vmax.f32 %v544, %v546
  %v587 = vmax.f32 %v547, %v549
  %v588 = vmax.f32 %v548, %v550
  %v589 = vmax.f32 %v551, %v553
  %v590 = vmax.f32 %v552, %v554
  %v591 = vpack.c.bf16 %v557, %v555
  %v592 = vpack.c.bf16 %v558, %v556
  %v593 = vpack.c.bf16 %v561, %v559
  %v594 = vpack.c.bf16 %v562, %v560
  %v595 = vpack.c.bf16 %v565, %v563
  %v596 = vpack.c.bf16 %v566, %v564
  %v597 = vpack.c.bf16 %v569, %v567
  %v598 = vpack.c.bf16 %v570, %v568
  %v599 = vpack.c.bf16 %v573, %v571
  %v600 = vpack.c.bf16 %v574, %v572
  %v601 = vpack.c.bf16 %v577, %v575
  %v602 = vpack.c.bf16 %v578, %v576
  %v603 = vpack.c.bf16 %v581, %v579
  %v604 = vpack.c.bf16 %v582, %v580
  %v605 = vpack.c.bf16 %v585, %v583
  %v606 = vpack.c.bf16 %v586, %v584
  %v607 = vpack.c.bf16 %v589, %v587
  %v608 = vpack.c.bf16 %v590, %v588
  %v609 = vld [vmem:[%s3] sm:$0xff]
  %v610 = vld [vmem:[%s3 + $0x8] sm:$0xff]
  %v611 = vld [vmem:[%s3 + $0x10] sm:$0xff]
  %v612 = vld [vmem:[%s3 + $0x18] sm:$0xff]
  %v613 = vld [vmem:[%s3 + $0x20] sm:$0xff]
  %v614 = vld [vmem:[%s3 + $0x28] sm:$0xff]
  %v615 = vld [vmem:[%s3 + $0x30] sm:$0xff]
  %v616 = vld [vmem:[%s3 + $0x38] sm:$0xff]
  %v617 = vld [vmem:[%s3 + $0x40] sm:$0xff]
  %v618 = vld [vmem:[%s3 + $0x48] sm:$0xff]
  %v619 = vld [vmem:[%s3 + $0x50] sm:$0xff]
  %v620 = vld [vmem:[%s3 + $0x58] sm:$0xff]
  %v621 = vld [vmem:[%s3 + $0x60] sm:$0xff]
  %v622 = vld [vmem:[%s3 + $0x68] sm:$0xff]
  %v623 = vld [vmem:[%s3 + $0x70] sm:$0xff]
  %v624 = vld [vmem:[%s3 + $0x78] sm:$0xff]
  %v625 = vld [vmem:[%s3 + $0x80] sm:$0xff]
  %v626 = vld [vmem:[%s3 + $0x88] sm:$0xff]
  %v627 = vld [vmem:[%s3 + $0x90] sm:$0xff]
  %v628 = vld [vmem:[%s3 + $0x98] sm:$0xff]
  %v629 = vld [vmem:[%s3 + $0xa0] sm:$0xff]
  %v630 = vld [vmem:[%s3 + $0xa8] sm:$0xff]
  %v631 = vld [vmem:[%s3 + $0xb0] sm:$0xff]
  %v632 = vld [vmem:[%s3 + $0xb8] sm:$0xff]
  %v633 = vld [vmem:[%s3 + $0xc0] sm:$0xff]
  %v634 = vld [vmem:[%s3 + $0xc8] sm:$0xff]
  %v635 = vld [vmem:[%s3 + $0xd0] sm:$0xff]
  %v636 = vld [vmem:[%s3 + $0xd8] sm:$0xff]
  %v637 = vld [vmem:[%s3 + $0xe0] sm:$0xff]
  %v638 = vld [vmem:[%s3 + $0xe8] sm:$0xff]
  %v639 = vld [vmem:[%s3 + $0xf0] sm:$0xff]
  %v640 = vld [vmem:[%s3 + $0xf8] sm:$0xff]
  %v641 = vld [vmem:[%s4] sm:$0x3]
  %v643 = vlaneseq
  %v644 = vshrl.u32 %v643, 7
  %v645 = vsub.s32 0, %v644
  %v646 = vrot.slane %v641, %v645
  %v647 = vlaneseq
  %v648 = vshrl.u32 %v647, 7
  %v649 = vsub.s32 1, %v648
  %v650 = vrot.slane %v641, %v649
  %v685 = vunpack.c.l.b16 %v609
  %v686 = vunpack.c.h.b16 %v609
  %v687 = vunpack.c.l.b16 %v610
  %v688 = vunpack.c.h.b16 %v610
  %v689 = vunpack.c.l.b16 %v611
  %v690 = vunpack.c.h.b16 %v611
  %v691 = vunpack.c.l.b16 %v612
  %v692 = vunpack.c.h.b16 %v612
  %v693 = vunpack.c.l.b16 %v613
  %v694 = vunpack.c.h.b16 %v613
  %v695 = vunpack.c.l.b16 %v614
  %v696 = vunpack.c.h.b16 %v614
  %v697 = vunpack.c.l.b16 %v615
  %v698 = vunpack.c.h.b16 %v615
  %v699 = vunpack.c.l.b16 %v616
  %v700 = vunpack.c.h.b16 %v616
  %v701 = vunpack.c.l.b16 %v617
  %v702 = vunpack.c.h.b16 %v617
  %v703 = vunpack.c.l.b16 %v618
  %v704 = vunpack.c.h.b16 %v618
  %v705 = vunpack.c.l.b16 %v619
  %v706 = vunpack.c.h.b16 %v619
  %v707 = vunpack.c.l.b16 %v620
  %v708 = vunpack.c.h.b16 %v620
  %v709 = vunpack.c.l.b16 %v621
  %v710 = vunpack.c.h.b16 %v621
  %v711 = vunpack.c.l.b16 %v622
  %v712 = vunpack.c.h.b16 %v622
  %v713 = vunpack.c.l.b16 %v623
  %v714 = vunpack.c.h.b16 %v623
  %v715 = vunpack.c.l.b16 %v624
  %v716 = vunpack.c.h.b16 %v624
  %v717 = vunpack.c.l.b16 %v625
  %v718 = vunpack.c.h.b16 %v625
  %v719 = vunpack.c.l.b16 %v626
  %v720 = vunpack.c.h.b16 %v626
  %v721 = vunpack.c.l.b16 %v627
  %v722 = vunpack.c.h.b16 %v627
  %v723 = vunpack.c.l.b16 %v628
  %v724 = vunpack.c.h.b16 %v628
  %v725 = vunpack.c.l.b16 %v629
  %v726 = vunpack.c.h.b16 %v629
  %v727 = vunpack.c.l.b16 %v630
  %v728 = vunpack.c.h.b16 %v630
  %v729 = vunpack.c.l.b16 %v631
  %v730 = vunpack.c.h.b16 %v631
  %v731 = vunpack.c.l.b16 %v632
  %v732 = vunpack.c.h.b16 %v632
  %v733 = vunpack.c.l.b16 %v633
  %v734 = vunpack.c.h.b16 %v633
  %v735 = vunpack.c.l.b16 %v634
  %v736 = vunpack.c.h.b16 %v634
  %v737 = vunpack.c.l.b16 %v635
  %v738 = vunpack.c.h.b16 %v635
  %v739 = vunpack.c.l.b16 %v636
  %v740 = vunpack.c.h.b16 %v636
  %v741 = vunpack.c.l.b16 %v637
  %v742 = vunpack.c.h.b16 %v637
  %v743 = vunpack.c.l.b16 %v638
  %v744 = vunpack.c.h.b16 %v638
  %v745 = vunpack.c.l.b16 %v639
  %v746 = vunpack.c.h.b16 %v639
  %v747 = vunpack.c.l.b16 %v640
  %v748 = vunpack.c.h.b16 %v640
  %v749 = vpack.c.b16 %v687, %v685
  %v750 = vpack.c.b16 %v688, %v686
  %v751 = vpack.c.b16 %v691, %v689
  %v752 = vpack.c.b16 %v692, %v690
  %v753 = vpack.c.b16 %v695, %v693
  %v754 = vpack.c.b16 %v696, %v694
  %v755 = vpack.c.b16 %v699, %v697
  %v756 = vpack.c.b16 %v700, %v698
  %v757 = vpack.c.b16 %v703, %v701
  %v758 = vpack.c.b16 %v704, %v702
  %v759 = vpack.c.b16 %v707, %v705
  %v760 = vpack.c.b16 %v708, %v706
  %v761 = vpack.c.b16 %v711, %v709
  %v762 = vpack.c.b16 %v712, %v710
  %v763 = vpack.c.b16 %v715, %v713
  %v764 = vpack.c.b16 %v716, %v714
  %v765 = vpack.c.b16 %v719, %v717
  %v766 = vpack.c.b16 %v720, %v718
  %v767 = vpack.c.b16 %v723, %v721
  %v768 = vpack.c.b16 %v724, %v722
  %v769 = vpack.c.b16 %v727, %v725
  %v770 = vpack.c.b16 %v728, %v726
  %v771 = vpack.c.b16 %v731, %v729
  %v772 = vpack.c.b16 %v732, %v730
  %v773 = vpack.c.b16 %v735, %v733
  %v774 = vpack.c.b16 %v736, %v734
  %v775 = vpack.c.b16 %v739, %v737
  %v776 = vpack.c.b16 %v740, %v738
  %v777 = vpack.c.b16 %v743, %v741
  %v778 = vpack.c.b16 %v744, %v742
  %v779 = vpack.c.b16 %v747, %v745
  %v780 = vpack.c.b16 %v748, %v746
  %813 = vmatprep.subr.bf16.mxu0 %v750
  %814 = vmatpush1.bf16.msra.mxu0 %v749
  %815 = vmatprep.subr.bf16.mxu0 %v752
  %816 = vmatpush1.bf16.msra.mxu0 %v751
  %817 = vmatprep.subr.bf16.mxu0 %v754
  %818 = vmatpush1.bf16.msra.mxu0 %v753
  %819 = vmatprep.subr.bf16.mxu0 %v756
  %820 = vmatpush1.bf16.msra.mxu0 %v755
  %821 = vmatprep.subr.bf16.mxu0 %v758
  %822 = vmatpush1.bf16.msra.mxu0 %v757
  %823 = vmatprep.subr.bf16.mxu0 %v760
  %824 = vmatpush1.bf16.msra.mxu0 %v759
  %825 = vmatprep.subr.bf16.mxu0 %v762
  %826 = vmatpush1.bf16.msra.mxu0 %v761
  %827 = vmatprep.subr.bf16.mxu0 %v764
  %828 = vmatpush1.bf16.msra.mxu0 %v763
  %829 = vmatprep.subr.bf16.mxu0 %v766
  %830 = vmatpush1.bf16.msra.mxu0 %v765
  %831 = vmatprep.subr.bf16.mxu0 %v768
  %832 = vmatpush1.bf16.msra.mxu0 %v767
  %833 = vmatprep.subr.bf16.mxu0 %v770
  %834 = vmatpush1.bf16.msra.mxu0 %v769
  %835 = vmatprep.subr.bf16.mxu0 %v772
  %836 = vmatpush1.bf16.msra.mxu0 %v771
  %837 = vmatprep.subr.bf16.mxu0 %v774
  %838 = vmatpush1.bf16.msra.mxu0 %v773
  %839 = vmatprep.subr.bf16.mxu0 %v776
  %840 = vmatpush1.bf16.msra.mxu0 %v775
  %841 = vmatprep.subr.bf16.mxu0 %v778
  %842 = vmatpush1.bf16.msra.mxu0 %v777
  %843 = vmatprep.subr.bf16.mxu0 %v780
  %844 = vmatpush1.bf16.msra.mxu0 %v779
  %845 = vmatprep.mubr.bf16.mxu0 %v592
  %846 = vmatmul.mubr.bf16.gmra.mrb[0].mxu0 %v591
  %v847 = vpop.f32.mrb[0].mxu0
  %v848 = vadd.f32 %v646, %v847
  %v849 = vpop.f32.mrb[0].mxu0
  %v850 = vadd.f32 %v650, %v849
  %v851 = vpop.f32.mrb[0].mxu0
  %v852 = vadd.f32 %v646, %v851
  %v853 = vpop.f32.mrb[0].mxu0
  %v854 = vadd.f32 %v650, %v853
  %855 = vmatprep.mubr.bf16.mxu0 %v594
  %856 = vmatmul.mubr.bf16.gmra.mrb[0].mxu0 %v593
  %v857 = vpop.f32.mrb[0].mxu0
  %v858 = vadd.f32 %v646, %v857
  %v859 = vpop.f32.mrb[0].mxu0
  %v860 = vadd.f32 %v650, %v859
  %v861 = vpop.f32.mrb[0].mxu0
  %v862 = vadd.f32 %v646, %v861
  %v863 = vpop.f32.mrb[0].mxu0
  %v864 = vadd.f32 %v650, %v863
  %865 = vmatprep.mubr.bf16.mxu0 %v596
  %866 = vmatmul.mubr.bf16.gmra.mrb[0].mxu0 %v595
  %v867 = vpop.f32.mrb[0].mxu0
  %v868 = vadd.f32 %v646, %v867
  %v869 = vpop.f32.mrb[0].mxu0
  %v870 = vadd.f32 %v650, %v869
  %v871 = vpop.f32.mrb[0].mxu0
  %v872 = vadd.f32 %v646, %v871
  %v873 = vpop.f32.mrb[0].mxu0
  %v874 = vadd.f32 %v650, %v873
  %875 = vmatprep.mubr.bf16.mxu0 %v598
  %876 = vmatmul.mubr.bf16.gmra.mrb[0].mxu0 %v597
  %v877 = vpop.f32.mrb[0].mxu0
  %v878 = vadd.f32 %v646, %v877
  %v879 = vpop.f32.mrb[0].mxu0
  %v880 = vadd.f32 %v650, %v879
  %v881 = vpop.f32.mrb[0].mxu0
  %v882 = vadd.f32 %v646, %v881
  %v883 = vpop.f32.mrb[0].mxu0
  %v884 = vadd.f32 %v650, %v883
  %885 = vmatprep.mubr.bf16.mxu0 %v600
  %886 = vmatmul.mubr.bf16.gmra.mrb[0].mxu0 %v599
  %v887 = vpop.f32.mrb[0].mxu0
  %v888 = vadd.f32 %v646, %v887
  %v889 = vpop.f32.mrb[0].mxu0
  %v890 = vadd.f32 %v650, %v889
  %v891 = vpop.f32.mrb[0].mxu0
  %v892 = vadd.f32 %v646, %v891
  %v893 = vpop.f32.mrb[0].mxu0
  %v894 = vadd.f32 %v650, %v893
  %895 = vmatprep.mubr.bf16.mxu0 %v602
  %896 = vmatmul.mubr.bf16.gmra.mrb[0].mxu0 %v601
  %v897 = vpop.f32.mrb[0].mxu0
  %v898 = vadd.f32 %v646, %v897
  %v899 = vpop.f32.mrb[0].mxu0
  %v900 = vadd.f32 %v650, %v899
  %v901 = vpop.f32.mrb[0].mxu0
  %v902 = vadd.f32 %v646, %v901
  %v903 = vpop.f32.mrb[0].mxu0
  %v904 = vadd.f32 %v650, %v903
  %905 = vmatprep.mubr.bf16.mxu0 %v604
  %906 = vmatmul.mubr.bf16.gmra.mrb[0].mxu0 %v603
  %v907 = vpop.f32.mrb[0].mxu0
  %v908 = vadd.f32 %v646, %v907
  %v909 = vpop.f32.mrb[0].mxu0
  %v910 = vadd.f32 %v650, %v909
  %v911 = vpop.f32.mrb[0].mxu0
  %v912 = vadd.f32 %v646, %v911
  %v913 = vpop.f32.mrb[0].mxu0
  %v914 = vadd.f32 %v650, %v913
  %915 = vmatprep.mubr.bf16.mxu0 %v606
  %916 = vmatmul.mubr.bf16.gmra.mrb[0].mxu0 %v605
  %v917 = vpop.f32.mrb[0].mxu0
  %v918 = vadd.f32 %v646, %v917
  %v919 = vpop.f32.mrb[0].mxu0
  %v920 = vadd.f32 %v650, %v919
  %v921 = vpop.f32.mrb[0].mxu0
  %v922 = vadd.f32 %v646, %v921
  %v923 = vpop.f32.mrb[0].mxu0
  %v924 = vadd.f32 %v650, %v923
  %925 = vmatprep.mubr.bf16.mxu0 %v608
  %926 = vmatmul.mubr.bf16.gmra.mrb[0].mxu0 %v607
  %v927 = vpop.f32.mrb[0].mxu0
  %v928 = vadd.f32 %v646, %v927
  %v929 = vpop.f32.mrb[0].mxu0
  %v930 = vadd.f32 %v650, %v929
  %v931 = vpop.f32.mrb[0].mxu0
  %v932 = vadd.f32 %v646, %v931
  %v933 = vpop.f32.mrb[0].mxu0
  %v934 = vadd.f32 %v650, %v933
  %935 = vdwg.mxu0
  %v936 = vmax.f32 %v848, 0.0
  %v937 = vmax.f32 %v850, 0.0
  %v938 = vmax.f32 %v852, 0.0
  %v939 = vmax.f32 %v854, 0.0
  %v940 = vmax.f32 %v858, 0.0
  %v941 = vmax.f32 %v860, 0.0
  %v942 = vmax.f32 %v862, 0.0
  %v943 = vmax.f32 %v864, 0.0
  %v944 = vmax.f32 %v868, 0.0
  %v945 = vmax.f32 %v870, 0.0
  %v946 = vmax.f32 %v872, 0.0
  %v947 = vmax.f32 %v874, 0.0
  %v948 = vmax.f32 %v878, 0.0
  %v949 = vmax.f32 %v880, 0.0
  %v950 = vmax.f32 %v882, 0.0
  %v951 = vmax.f32 %v884, 0.0
  %v952 = vmax.f32 %v888, 0.0
  %v953 = vmax.f32 %v890, 0.0
  %v954 = vmax.f32 %v892, 0.0
  %v955 = vmax.f32 %v894, 0.0
  %v956 = vmax.f32 %v898, 0.0
  %v957 = vmax.f32 %v900, 0.0
  %v958 = vmax.f32 %v902, 0.0
  %v959 = vmax.f32 %v904, 0.0
  %v960 = vmax.f32 %v908, 0.0
  %v961 = vmax.f32 %v910, 0.0
  %v962 = vmax.f32 %v912, 0.0
  %v963 = vmax.f32 %v914, 0.0
  %v964 = vmax.f32 %v918, 0.0
  %v965 = vmax.f32 %v920, 0.0
  %v966 = vmax.f32 %v922, 0.0
  %v967 = vmax.f32 %v924, 0.0
  %v968 = vmax.f32 %v928, 0.0
  %v969 = vmax.f32 %v930, 0.0
  %v970 = vmax.f32 %v932, 0.0
  %v971 = vmax.f32 %v934, 0.0
  %v972 = vmax.f32 %v936, %v937
  %v973 = vmax.f32 %v938, %v939
  %v974 = vmax.f32 %v940, %v941
  %v975 = vmax.f32 %v942, %v943
  %v976 = vmax.f32 %v944, %v945
  %v977 = vmax.f32 %v946, %v947
  %v978 = vmax.f32 %v948, %v949
  %v979 = vmax.f32 %v950, %v951
  %v980 = vmax.f32 %v952, %v953
  %v981 = vmax.f32 %v954, %v955
  %v982 = vmax.f32 %v956, %v957
  %v983 = vmax.f32 %v958, %v959
  %v984 = vmax.f32 %v960, %v961
  %v985 = vmax.f32 %v962, %v963
  %v986 = vmax.f32 %v964, %v965
  %v987 = vmax.f32 %v966, %v967
  %v988 = vmax.f32 %v968, %v969
  %v989 = vmax.f32 %v970, %v971
  %v990 = vpack.c.bf16 %v972, %v972
  %v991 = vpack.c.bf16 %v973, %v973
  %v992 = vpack.c.bf16 %v974, %v974
  %v993 = vpack.c.bf16 %v975, %v975
  %v994 = vpack.c.bf16 %v976, %v976
  %v995 = vpack.c.bf16 %v977, %v977
  %v996 = vpack.c.bf16 %v978, %v978
  %v997 = vpack.c.bf16 %v979, %v979
  %v998 = vpack.c.bf16 %v980, %v980
  %v999 = vpack.c.bf16 %v981, %v981
  %v1000 = vpack.c.bf16 %v982, %v982
  %v1001 = vpack.c.bf16 %v983, %v983
  %v1002 = vpack.c.bf16 %v984, %v984
  %v1003 = vpack.c.bf16 %v985, %v985
  %v1004 = vpack.c.bf16 %v986, %v986
  %v1005 = vpack.c.bf16 %v987, %v987
  %v1006 = vpack.c.bf16 %v988, %v988
  %v1007 = vpack.c.bf16 %v989, %v989
  %v1008 = vld [vmem:[%s5] sm:$0xf]
  %v1009 = vld [vmem:[%s5 + $0x4] sm:$0xf]
  %v1010 = vld [vmem:[%s5 + $0x8] sm:$0xf]
  %v1011 = vld [vmem:[%s5 + $0xc] sm:$0xf]
  %v1012 = vld [vmem:[%s5 + $0x10] sm:$0xf]
  %v1013 = vld [vmem:[%s5 + $0x14] sm:$0xf]
  %v1014 = vld [vmem:[%s5 + $0x18] sm:$0xf]
  %v1015 = vld [vmem:[%s5 + $0x1c] sm:$0xf]
  %v1016 = vld [vmem:[%s5 + $0x20] sm:$0xf]
  %v1017 = vld [vmem:[%s5 + $0x24] sm:$0xf]
  %v1018 = vld [vmem:[%s5 + $0x28] sm:$0xf]
  %v1019 = vld [vmem:[%s5 + $0x2c] sm:$0xf]
  %v1020 = vld [vmem:[%s5 + $0x30] sm:$0xf]
  %v1021 = vld [vmem:[%s5 + $0x34] sm:$0xf]
  %v1022 = vld [vmem:[%s5 + $0x38] sm:$0xf]
  %v1023 = vld [vmem:[%s5 + $0x3c] sm:$0xf]
  %v1024 = vld [vmem:[%s5 + $0x40] sm:$0xf]
  %v1025 = vld [vmem:[%s5 + $0x44] sm:$0xf]
  %v1026 = vld [vmem:[%s5 + $0x48] sm:$0xf]
  %v1027 = vld [vmem:[%s5 + $0x4c] sm:$0xf]
  %v1028 = vld [vmem:[%s5 + $0x50] sm:$0xf]
  %v1029 = vld [vmem:[%s5 + $0x54] sm:$0xf]
  %v1030 = vld [vmem:[%s5 + $0x58] sm:$0xf]
  %v1031 = vld [vmem:[%s5 + $0x5c] sm:$0xf]
  %v1032 = vld [vmem:[%s5 + $0x60] sm:$0xf]
  %v1033 = vld [vmem:[%s5 + $0x64] sm:$0xf]
  %v1034 = vld [vmem:[%s5 + $0x68] sm:$0xf]
  %v1035 = vld [vmem:[%s5 + $0x6c] sm:$0xf]
  %v1036 = vld [vmem:[%s5 + $0x70] sm:$0xf]
  %v1037 = vld [vmem:[%s5 + $0x74] sm:$0xf]
  %v1038 = vld [vmem:[%s5 + $0x78] sm:$0xf]
  %v1039 = vld [vmem:[%s5 + $0x7c] sm:$0xf]
  %v1040 = vld [vmem:[%s5 + $0x80] sm:$0xf]
  %v1041 = vld [vmem:[%s5 + $0x84] sm:$0xf]
  %v1042 = vld [vmem:[%s5 + $0x88] sm:$0xf]
  %v1043 = vld [vmem:[%s5 + $0x8c] sm:$0xf]
  %v1044 = vld [vmem:[%s5 + $0x90] sm:$0xf]
  %v1045 = vld [vmem:[%s5 + $0x94] sm:$0xf]
  %v1046 = vld [vmem:[%s5 + $0x98] sm:$0xf]
  %v1047 = vld [vmem:[%s5 + $0x9c] sm:$0xf]
  %v1048 = vld [vmem:[%s5 + $0xa0] sm:$0xf]
  %v1049 = vld [vmem:[%s5 + $0xa4] sm:$0xf]
  %v1050 = vld [vmem:[%s5 + $0xa8] sm:$0xf]
  %v1051 = vld [vmem:[%s5 + $0xac] sm:$0xf]
  %v1052 = vld [vmem:[%s5 + $0xb0] sm:$0xf]
  %v1053 = vld [vmem:[%s5 + $0xb4] sm:$0xf]
  %v1054 = vld [vmem:[%s5 + $0xb8] sm:$0xf]
  %v1055 = vld [vmem:[%s5 + $0xbc] sm:$0xf]
  %v1056 = vld [vmem:[%s5 + $0xc0] sm:$0xf]
  %v1057 = vld [vmem:[%s5 + $0xc4] sm:$0xf]
  %v1058 = vld [vmem:[%s5 + $0xc8] sm:$0xf]
  %v1059 = vld [vmem:[%s5 + $0xcc] sm:$0xf]
  %v1060 = vld [vmem:[%s5 + $0xd0] sm:$0xf]
  %v1061 = vld [vmem:[%s5 + $0xd4] sm:$0xf]
  %v1062 = vld [vmem:[%s5 + $0xd8] sm:$0xf]
  %v1063 = vld [vmem:[%s5 + $0xdc] sm:$0xf]
  %v1064 = vld [vmem:[%s5 + $0xe0] sm:$0xf]
  %v1065 = vld [vmem:[%s5 + $0xe4] sm:$0xf]
  %v1066 = vld [vmem:[%s5 + $0xe8] sm:$0xf]
  %v1067 = vld [vmem:[%s5 + $0xec] sm:$0xf]
  %v1068 = vld [vmem:[%s5 + $0xf0] sm:$0xf]
  %v1069 = vld [vmem:[%s5 + $0xf4] sm:$0xf]
  %v1070 = vld [vmem:[%s5 + $0xf8] sm:$0xf]
  %v1071 = vld [vmem:[%s5 + $0xfc] sm:$0xf]
  %v1072 = vld [vmem:[%s5 + $0x100] sm:$0xf]
  %v1073 = vld [vmem:[%s5 + $0x104] sm:$0xf]
  %v1074 = vld [vmem:[%s5 + $0x108] sm:$0xf]
  %v1075 = vld [vmem:[%s5 + $0x10c] sm:$0xf]
  %v1076 = vld [vmem:[%s5 + $0x110] sm:$0xf]
  %v1077 = vld [vmem:[%s5 + $0x114] sm:$0xf]
  %v1078 = vld [vmem:[%s5 + $0x118] sm:$0xf]
  %v1079 = vld [vmem:[%s5 + $0x11c] sm:$0xf]
  %v1080 = vld [vmem:[%s5 + $0x120] sm:$0xf]
  %v1081 = vld [vmem:[%s5 + $0x124] sm:$0xf]
  %v1082 = vld [vmem:[%s5 + $0x128] sm:$0xf]
  %v1083 = vld [vmem:[%s5 + $0x12c] sm:$0xf]
  %v1084 = vld [vmem:[%s5 + $0x130] sm:$0xf]
  %v1085 = vld [vmem:[%s5 + $0x134] sm:$0xf]
  %v1086 = vld [vmem:[%s5 + $0x138] sm:$0xf]
  %v1087 = vld [vmem:[%s5 + $0x13c] sm:$0xf]
  %v1088 = vld [vmem:[%s5 + $0x140] sm:$0xf]
  %v1089 = vld [vmem:[%s5 + $0x144] sm:$0xf]
  %v1090 = vld [vmem:[%s5 + $0x148] sm:$0xf]
  %v1091 = vld [vmem:[%s5 + $0x14c] sm:$0xf]
  %v1092 = vld [vmem:[%s5 + $0x150] sm:$0xf]
  %v1093 = vld [vmem:[%s5 + $0x154] sm:$0xf]
  %v1094 = vld [vmem:[%s5 + $0x158] sm:$0xf]
  %v1095 = vld [vmem:[%s5 + $0x15c] sm:$0xf]
  %v1096 = vld [vmem:[%s5 + $0x160] sm:$0xf]
  %v1097 = vld [vmem:[%s5 + $0x164] sm:$0xf]
  %v1098 = vld [vmem:[%s5 + $0x168] sm:$0xf]
  %v1099 = vld [vmem:[%s5 + $0x16c] sm:$0xf]
  %v1100 = vld [vmem:[%s5 + $0x170] sm:$0xf]
  %v1101 = vld [vmem:[%s5 + $0x174] sm:$0xf]
  %v1102 = vld [vmem:[%s5 + $0x178] sm:$0xf]
  %v1103 = vld [vmem:[%s5 + $0x17c] sm:$0xf]
  %v1104 = vld [vmem:[%s5 + $0x180] sm:$0xf]
  %v1105 = vld [vmem:[%s5 + $0x184] sm:$0xf]
  %v1106 = vld [vmem:[%s5 + $0x188] sm:$0xf]
  %v1107 = vld [vmem:[%s5 + $0x18c] sm:$0xf]
  %v1108 = vld [vmem:[%s5 + $0x190] sm:$0xf]
  %v1109 = vld [vmem:[%s5 + $0x194] sm:$0xf]
  %v1110 = vld [vmem:[%s5 + $0x198] sm:$0xf]
  %v1111 = vld [vmem:[%s5 + $0x19c] sm:$0xf]
  %v1112 = vld [vmem:[%s5 + $0x1a0] sm:$0xf]
  %v1113 = vld [vmem:[%s5 + $0x1a4] sm:$0xf]
  %v1114 = vld [vmem:[%s5 + $0x1a8] sm:$0xf]
  %v1115 = vld [vmem:[%s5 + $0x1ac] sm:$0xf]
  %v1116 = vld [vmem:[%s5 + $0x1b0] sm:$0xf]
  %v1117 = vld [vmem:[%s5 + $0x1b4] sm:$0xf]
  %v1118 = vld [vmem:[%s5 + $0x1b8] sm:$0xf]
  %v1119 = vld [vmem:[%s5 + $0x1bc] sm:$0xf]
  %v1120 = vld [vmem:[%s5 + $0x1c0] sm:$0xf]
  %v1121 = vld [vmem:[%s5 + $0x1c4] sm:$0xf]
  %v1122 = vld [vmem:[%s5 + $0x1c8] sm:$0xf]
  %v1123 = vld [vmem:[%s5 + $0x1cc] sm:$0xf]
  %v1124 = vld [vmem:[%s5 + $0x1d0] sm:$0xf]
  %v1125 = vld [vmem:[%s5 + $0x1d4] sm:$0xf]
  %v1126 = vld [vmem:[%s5 + $0x1d8] sm:$0xf]
  %v1127 = vld [vmem:[%s5 + $0x1dc] sm:$0xf]
  %v1128 = vld [vmem:[%s5 + $0x1e0] sm:$0xf]
  %v1129 = vld [vmem:[%s5 + $0x1e4] sm:$0xf]
  %v1130 = vld [vmem:[%s5 + $0x1e8] sm:$0xf]
  %v1131 = vld [vmem:[%s5 + $0x1ec] sm:$0xf]
  %v1132 = vld [vmem:[%s5 + $0x1f0] sm:$0xf]
  %v1133 = vld [vmem:[%s5 + $0x1f4] sm:$0xf]
  %v1134 = vld [vmem:[%s5 + $0x1f8] sm:$0xf]
  %v1135 = vld [vmem:[%s5 + $0x1fc] sm:$0xf]
  %v1136 = vld [vmem:[%s5 + $0x200] sm:$0xf]
  %v1137 = vld [vmem:[%s5 + $0x204] sm:$0xf]
  %v1138 = vld [vmem:[%s5 + $0x208] sm:$0xf]
  %v1139 = vld [vmem:[%s5 + $0x20c] sm:$0xf]
  %v1140 = vld [vmem:[%s5 + $0x210] sm:$0xf]
  %v1141 = vld [vmem:[%s5 + $0x214] sm:$0xf]
  %v1142 = vld [vmem:[%s5 + $0x218] sm:$0xf]
  %v1143 = vld [vmem:[%s5 + $0x21c] sm:$0xf]
  %v1144 = vld [vmem:[%s5 + $0x220] sm:$0xf]
  %v1145 = vld [vmem:[%s5 + $0x224] sm:$0xf]
  %v1146 = vld [vmem:[%s5 + $0x228] sm:$0xf]
  %v1147 = vld [vmem:[%s5 + $0x22c] sm:$0xf]
  %v1148 = vld [vmem:[%s5 + $0x230] sm:$0xf]
  %v1149 = vld [vmem:[%s5 + $0x234] sm:$0xf]
  %v1150 = vld [vmem:[%s5 + $0x238] sm:$0xf]
  %v1151 = vld [vmem:[%s5 + $0x23c] sm:$0xf]
  %v1152 = vld [vmem:[%s5 + $0x240] sm:$0xf]
  %v1153 = vld [vmem:[%s5 + $0x244] sm:$0xf]
  %v1154 = vld [vmem:[%s5 + $0x248] sm:$0xf]
  %v1155 = vld [vmem:[%s5 + $0x24c] sm:$0xf]
  %v1156 = vld [vmem:[%s5 + $0x250] sm:$0xf]
  %v1157 = vld [vmem:[%s5 + $0x254] sm:$0xf]
  %v1158 = vld [vmem:[%s5 + $0x258] sm:$0xf]
  %v1159 = vld [vmem:[%s5 + $0x25c] sm:$0xf]
  %v1160 = vld [vmem:[%s5 + $0x260] sm:$0xf]
  %v1161 = vld [vmem:[%s5 + $0x264] sm:$0xf]
  %v1162 = vld [vmem:[%s5 + $0x268] sm:$0xf]
  %v1163 = vld [vmem:[%s5 + $0x26c] sm:$0xf]
  %v1164 = vld [vmem:[%s5 + $0x270] sm:$0xf]
  %v1165 = vld [vmem:[%s5 + $0x274] sm:$0xf]
  %v1166 = vld [vmem:[%s5 + $0x278] sm:$0xf]
  %v1167 = vld [vmem:[%s5 + $0x27c] sm:$0xf]
  %v1168 = vld [vmem:[%s5 + $0x280] sm:$0xf]
  %v1169 = vld [vmem:[%s5 + $0x284] sm:$0xf]
  %v1170 = vld [vmem:[%s5 + $0x288] sm:$0xf]
  %v1171 = vld [vmem:[%s5 + $0x28c] sm:$0xf]
  %v1172 = vld [vmem:[%s5 + $0x290] sm:$0xf]
  %v1173 = vld [vmem:[%s5 + $0x294] sm:$0xf]
  %v1174 = vld [vmem:[%s5 + $0x298] sm:$0xf]
  %v1175 = vld [vmem:[%s5 + $0x29c] sm:$0xf]
  %v1176 = vld [vmem:[%s5 + $0x2a0] sm:$0xf]
  %v1177 = vld [vmem:[%s5 + $0x2a4] sm:$0xf]
  %v1178 = vld [vmem:[%s5 + $0x2a8] sm:$0xf]
  %v1179 = vld [vmem:[%s5 + $0x2ac] sm:$0xf]
  %v1180 = vld [vmem:[%s5 + $0x2b0] sm:$0xf]
  %v1181 = vld [vmem:[%s5 + $0x2b4] sm:$0xf]
  %v1182 = vld [vmem:[%s5 + $0x2b8] sm:$0xf]
  %v1183 = vld [vmem:[%s5 + $0x2bc] sm:$0xf]
  %v1184 = vld [vmem:[%s5 + $0x2c0] sm:$0xf]
  %v1185 = vld [vmem:[%s5 + $0x2c4] sm:$0xf]
  %v1186 = vld [vmem:[%s5 + $0x2c8] sm:$0xf]
  %v1187 = vld [vmem:[%s5 + $0x2cc] sm:$0xf]
  %v1188 = vld [vmem:[%s5 + $0x2d0] sm:$0xf]
  %v1189 = vld [vmem:[%s5 + $0x2d4] sm:$0xf]
  %v1190 = vld [vmem:[%s5 + $0x2d8] sm:$0xf]
  %v1191 = vld [vmem:[%s5 + $0x2dc] sm:$0xf]
  %v1192 = vld [vmem:[%s5 + $0x2e0] sm:$0xf]
  %v1193 = vld [vmem:[%s5 + $0x2e4] sm:$0xf]
  %v1194 = vld [vmem:[%s5 + $0x2e8] sm:$0xf]
  %v1195 = vld [vmem:[%s5 + $0x2ec] sm:$0xf]
  %v1196 = vld [vmem:[%s5 + $0x2f0] sm:$0xf]
  %v1197 = vld [vmem:[%s5 + $0x2f4] sm:$0xf]
  %v1198 = vld [vmem:[%s5 + $0x2f8] sm:$0xf]
  %v1199 = vld [vmem:[%s5 + $0x2fc] sm:$0xf]
  %v1200 = vld [vmem:[%s5 + $0x300] sm:$0xf]
  %v1201 = vld [vmem:[%s5 + $0x304] sm:$0xf]
  %v1202 = vld [vmem:[%s5 + $0x308] sm:$0xf]
  %v1203 = vld [vmem:[%s5 + $0x30c] sm:$0xf]
  %v1204 = vld [vmem:[%s5 + $0x310] sm:$0xf]
  %v1205 = vld [vmem:[%s5 + $0x314] sm:$0xf]
  %v1206 = vld [vmem:[%s5 + $0x318] sm:$0xf]
  %v1207 = vld [vmem:[%s5 + $0x31c] sm:$0xf]
  %v1208 = vld [vmem:[%s5 + $0x320] sm:$0xf]
  %v1209 = vld [vmem:[%s5 + $0x324] sm:$0xf]
  %v1210 = vld [vmem:[%s5 + $0x328] sm:$0xf]
  %v1211 = vld [vmem:[%s5 + $0x32c] sm:$0xf]
  %v1212 = vld [vmem:[%s5 + $0x330] sm:$0xf]
  %v1213 = vld [vmem:[%s5 + $0x334] sm:$0xf]
  %v1214 = vld [vmem:[%s5 + $0x338] sm:$0xf]
  %v1215 = vld [vmem:[%s5 + $0x33c] sm:$0xf]
  %v1216 = vld [vmem:[%s5 + $0x340] sm:$0xf]
  %v1217 = vld [vmem:[%s5 + $0x344] sm:$0xf]
  %v1218 = vld [vmem:[%s5 + $0x348] sm:$0xf]
  %v1219 = vld [vmem:[%s5 + $0x34c] sm:$0xf]
  %v1220 = vld [vmem:[%s5 + $0x350] sm:$0xf]
  %v1221 = vld [vmem:[%s5 + $0x354] sm:$0xf]
  %v1222 = vld [vmem:[%s5 + $0x358] sm:$0xf]
  %v1223 = vld [vmem:[%s5 + $0x35c] sm:$0xf]
  %v1224 = vld [vmem:[%s5 + $0x360] sm:$0xf]
  %v1225 = vld [vmem:[%s5 + $0x364] sm:$0xf]
  %v1226 = vld [vmem:[%s5 + $0x368] sm:$0xf]
  %v1227 = vld [vmem:[%s5 + $0x36c] sm:$0xf]
  %v1228 = vld [vmem:[%s5 + $0x370] sm:$0xf]
  %v1229 = vld [vmem:[%s5 + $0x374] sm:$0xf]
  %v1230 = vld [vmem:[%s5 + $0x378] sm:$0xf]
  %v1231 = vld [vmem:[%s5 + $0x37c] sm:$0xf]
  %v1232 = vld [vmem:[%s5 + $0x380] sm:$0xf]
  %v1233 = vld [vmem:[%s5 + $0x384] sm:$0xf]
  %v1234 = vld [vmem:[%s5 + $0x388] sm:$0xf]
  %v1235 = vld [vmem:[%s5 + $0x38c] sm:$0xf]
  %v1236 = vld [vmem:[%s5 + $0x390] sm:$0xf]
  %v1237 = vld [vmem:[%s5 + $0x394] sm:$0xf]
  %v1238 = vld [vmem:[%s5 + $0x398] sm:$0xf]
  %v1239 = vld [vmem:[%s5 + $0x39c] sm:$0xf]
  %v1240 = vld [vmem:[%s5 + $0x3a0] sm:$0xf]
  %v1241 = vld [vmem:[%s5 + $0x3a4] sm:$0xf]
  %v1242 = vld [vmem:[%s5 + $0x3a8] sm:$0xf]
  %v1243 = vld [vmem:[%s5 + $0x3ac] sm:$0xf]
  %v1244 = vld [vmem:[%s5 + $0x3b0] sm:$0xf]
  %v1245 = vld [vmem:[%s5 + $0x3b4] sm:$0xf]
  %v1246 = vld [vmem:[%s5 + $0x3b8] sm:$0xf]
  %v1247 = vld [vmem:[%s5 + $0x3bc] sm:$0xf]
  %v1248 = vld [vmem:[%s5 + $0x3c0] sm:$0xf]
  %v1249 = vld [vmem:[%s5 + $0x3c4] sm:$0xf]
  %v1250 = vld [vmem:[%s5 + $0x3c8] sm:$0xf]
  %v1251 = vld [vmem:[%s5 + $0x3cc] sm:$0xf]
  %v1252 = vld [vmem:[%s5 + $0x3d0] sm:$0xf]
  %v1253 = vld [vmem:[%s5 + $0x3d4] sm:$0xf]
  %v1254 = vld [vmem:[%s5 + $0x3d8] sm:$0xf]
  %v1255 = vld [vmem:[%s5 + $0x3dc] sm:$0xf]
  %v1256 = vld [vmem:[%s5 + $0x3e0] sm:$0xf]
  %v1257 = vld [vmem:[%s5 + $0x3e4] sm:$0xf]
  %v1258 = vld [vmem:[%s5 + $0x3e8] sm:$0xf]
  %v1259 = vld [vmem:[%s5 + $0x3ec] sm:$0xf]
  %v1260 = vld [vmem:[%s5 + $0x3f0] sm:$0xf]
  %v1261 = vld [vmem:[%s5 + $0x3f4] sm:$0xf]
  %v1262 = vld [vmem:[%s5 + $0x3f8] sm:$0xf]
  %v1263 = vld [vmem:[%s5 + $0x3fc] sm:$0xf]
  %v1264 = vld [vmem:[%s5 + $0x400] sm:$0xf]
  %v1265 = vld [vmem:[%s5 + $0x404] sm:$0xf]
  %v1266 = vld [vmem:[%s5 + $0x408] sm:$0xf]
  %v1267 = vld [vmem:[%s5 + $0x40c] sm:$0xf]
  %v1268 = vld [vmem:[%s5 + $0x410] sm:$0xf]
  %v1269 = vld [vmem:[%s5 + $0x414] sm:$0xf]
  %v1270 = vld [vmem:[%s5 + $0x418] sm:$0xf]
  %v1271 = vld [vmem:[%s5 + $0x41c] sm:$0xf]
  %v1272 = vld [vmem:[%s5 + $0x420] sm:$0xf]
  %v1273 = vld [vmem:[%s5 + $0x424] sm:$0xf]
  %v1274 = vld [vmem:[%s5 + $0x428] sm:$0xf]
  %v1275 = vld [vmem:[%s5 + $0x42c] sm:$0xf]
  %v1276 = vld [vmem:[%s5 + $0x430] sm:$0xf]
  %v1277 = vld [vmem:[%s5 + $0x434] sm:$0xf]
  %v1278 = vld [vmem:[%s5 + $0x438] sm:$0xf]
  %v1279 = vld [vmem:[%s5 + $0x43c] sm:$0xf]
  %v1280 = vld [vmem:[%s5 + $0x440] sm:$0xf]
  %v1281 = vld [vmem:[%s5 + $0x444] sm:$0xf]
  %v1282 = vld [vmem:[%s5 + $0x448] sm:$0xf]
  %v1283 = vld [vmem:[%s5 + $0x44c] sm:$0xf]
  %v1284 = vld [vmem:[%s5 + $0x450] sm:$0xf]
  %v1285 = vld [vmem:[%s5 + $0x454] sm:$0xf]
  %v1286 = vld [vmem:[%s5 + $0x458] sm:$0xf]
  %v1287 = vld [vmem:[%s5 + $0x45c] sm:$0xf]
  %v1288 = vld [vmem:[%s5 + $0x460] sm:$0xf]
  %v1289 = vld [vmem:[%s5 + $0x464] sm:$0xf]
  %v1290 = vld [vmem:[%s5 + $0x468] sm:$0xf]
  %v1291 = vld [vmem:[%s5 + $0x46c] sm:$0xf]
  %v1292 = vld [vmem:[%s5 + $0x470] sm:$0xf]
  %v1293 = vld [vmem:[%s5 + $0x474] sm:$0xf]
  %v1294 = vld [vmem:[%s5 + $0x478] sm:$0xf]
  %v1295 = vld [vmem:[%s5 + $0x47c] sm:$0xf]
  %v1312 = vunpack.c.l.b16 %v1008
  %v1313 = vunpack.c.l.b16 %v1009
  %v1314 = vunpack.c.l.b16 %v1010
  %v1315 = vunpack.c.l.b16 %v1011
  %v1316 = vunpack.c.l.b16 %v1012
  %v1317 = vunpack.c.l.b16 %v1013
  %v1318 = vunpack.c.l.b16 %v1014
  %v1319 = vunpack.c.l.b16 %v1015
  %v1320 = vunpack.c.l.b16 %v1016
  %v1321 = vunpack.c.l.b16 %v1017
  %v1322 = vunpack.c.l.b16 %v1018
  %v1323 = vunpack.c.l.b16 %v1019
  %v1324 = vunpack.c.l.b16 %v1020
  %v1325 = vunpack.c.l.b16 %v1021
  %v1326 = vunpack.c.l.b16 %v1022
  %v1327 = vunpack.c.l.b16 %v1023
  %v1328 = vpack.c.b16 %v1313, %v1312
  %v1329 = vpack.c.b16 %v1315, %v1314
  %v1330 = vpack.c.b16 %v1317, %v1316
  %v1331 = vpack.c.b16 %v1319, %v1318
  %v1332 = vpack.c.b16 %v1321, %v1320
  %v1333 = vpack.c.b16 %v1323, %v1322
  %v1334 = vpack.c.b16 %v1325, %v1324
  %v1335 = vpack.c.b16 %v1327, %v1326
  %1344 = vmatprep.subr.bf16.mxu0 0
  %1345 = vmatpush1.bf16.msra.mxu0 %v1328
  %1346 = vmatprep.subr.bf16.mxu0 0
  %1347 = vmatpush1.bf16.msra.mxu0 %v1329
  %1348 = vmatprep.subr.bf16.mxu0 0
  %1349 = vmatpush1.bf16.msra.mxu0 %v1330
  %1350 = vmatprep.subr.bf16.mxu0 0
  %1351 = vmatpush1.bf16.msra.mxu0 %v1331
  %1352 = vmatprep.subr.bf16.mxu0 0
  %1353 = vmatpush1.bf16.msra.mxu0 %v1332
  %1354 = vmatprep.subr.bf16.mxu0 0
  %1355 = vmatpush1.bf16.msra.mxu0 %v1333
  %1356 = vmatprep.subr.bf16.mxu0 0
  %1357 = vmatpush1.bf16.msra.mxu0 %v1334
  %1358 = vmatprep.subr.bf16.mxu0 0
  %1359 = vmatpush1.bf16.msra.mxu0 %v1335
  %1360 = vmatprep.subr.bf16.mxu0 0
  %1361 = vmatpush1.bf16.msra.mxu0 0
  %1362 = vmatprep.subr.bf16.mxu0 0
  %1363 = vmatpush1.bf16.msra.mxu0 0
  %1364 = vmatprep.subr.bf16.mxu0 0
  %1365 = vmatpush1.bf16.msra.mxu0 0
  %1366 = vmatprep.subr.bf16.mxu0 0
  %1367 = vmatpush1.bf16.msra.mxu0 0
  %1368 = vmatprep.subr.bf16.mxu0 0
  %1369 = vmatpush1.bf16.msra.mxu0 0
  %1370 = vmatprep.subr.bf16.mxu0 0
  %1371 = vmatpush1.bf16.msra.mxu0 0
  %1372 = vmatprep.subr.bf16.mxu0 0
  %1373 = vmatpush1.bf16.msra.mxu0 0
  %1374 = vmatprep.subr.bf16.mxu0 0
  %1375 = vmatpush1.bf16.msra.mxu0 0
  %1376 = vmatprep.mubr.bf16.mxu0 0
  %1377 = vmatmul.mubr.bf16.gmra.mrb[0].mxu0 %v990
  %v1378 = vpop.f32.mrb[0].mxu0
  %v1379 = vadd.f32 0.0, %v1378
  %v1380 = vpop.f32.mrb[0].mxu0
  %v1381 = vpop.f32.mrb[0].mxu0
  %v1382 = vpop.f32.mrb[0].mxu0
  %1383 = vdwg.mxu0
  %v1400 = vunpack.c.l.b16 %v1024
  %v1401 = vunpack.c.l.b16 %v1025
  %v1402 = vunpack.c.l.b16 %v1026
  %v1403 = vunpack.c.l.b16 %v1027
  %v1404 = vunpack.c.l.b16 %v1028
  %v1405 = vunpack.c.l.b16 %v1029
  %v1406 = vunpack.c.l.b16 %v1030
  %v1407 = vunpack.c.l.b16 %v1031
  %v1408 = vunpack.c.l.b16 %v1032
  %v1409 = vunpack.c.l.b16 %v1033
  %v1410 = vunpack.c.l.b16 %v1034
  %v1411 = vunpack.c.l.b16 %v1035
  %v1412 = vunpack.c.l.b16 %v1036
  %v1413 = vunpack.c.l.b16 %v1037
  %v1414 = vunpack.c.l.b16 %v1038
  %v1415 = vunpack.c.l.b16 %v1039
  %v1416 = vpack.c.b16 %v1401, %v1400
  %v1417 = vpack.c.b16 %v1403, %v1402
  %v1418 = vpack.c.b16 %v1405, %v1404
  %v1419 = vpack.c.b16 %v1407, %v1406
  %v1420 = vpack.c.b16 %v1409, %v1408
  %v1421 = vpack.c.b16 %v1411, %v1410
  %v1422 = vpack.c.b16 %v1413, %v1412
  %v1423 = vpack.c.b16 %v1415, %v1414
  %1432 = vmatprep.subr.bf16.mxu0 0
  %1433 = vmatpush1.bf16.msra.mxu0 %v1416
  %1434 = vmatprep.subr.bf16.mxu0 0
  %1435 = vmatpush1.bf16.msra.mxu0 %v1417
  %1436 = vmatprep.subr.bf16.mxu0 0
  %1437 = vmatpush1.bf16.msra.mxu0 %v1418
  %1438 = vmatprep.subr.bf16.mxu0 0
  %1439 = vmatpush1.bf16.msra.mxu0 %v1419
  %1440 = vmatprep.subr.bf16.mxu0 0
  %1441 = vmatpush1.bf16.msra.mxu0 %v1420
  %1442 = vmatprep.subr.bf16.mxu0 0
  %1443 = vmatpush1.bf16.msra.mxu0 %v1421
  %1444 = vmatprep.subr.bf16.mxu0 0
  %1445 = vmatpush1.bf16.msra.mxu0 %v1422
  %1446 = vmatprep.subr.bf16.mxu0 0
  %1447 = vmatpush1.bf16.msra.mxu0 %v1423
  %1448 = vmatprep.subr.bf16.mxu0 0
  %1449 = vmatpush1.bf16.msra.mxu0 0
  %1450 = vmatprep.subr.bf16.mxu0 0
  %1451 = vmatpush1.bf16.msra.mxu0 0
  %1452 = vmatprep.subr.bf16.mxu0 0
  %1453 = vmatpush1.bf16.msra.mxu0 0
  %1454 = vmatprep.subr.bf16.mxu0 0
  %1455 = vmatpush1.bf16.msra.mxu0 0
  %1456 = vmatprep.subr.bf16.mxu0 0
  %1457 = vmatpush1.bf16.msra.mxu0 0
  %1458 = vmatprep.subr.bf16.mxu0 0
  %1459 = vmatpush1.bf16.msra.mxu0 0
  %1460 = vmatprep.subr.bf16.mxu0 0
  %1461 = vmatpush1.bf16.msra.mxu0 0
  %1462 = vmatprep.subr.bf16.mxu0 0
  %1463 = vmatpush1.bf16.msra.mxu0 0
  %1464 = vmatprep.mubr.bf16.mxu0 0
  %1465 = vmatmul.mubr.bf16.gmra.mrb[0].mxu0 %v991
  %v1466 = vpop.f32.mrb[0].mxu0
  %v1467 = vadd.f32 0.0, %v1466
  %v1468 = vpop.f32.mrb[0].mxu0
  %v1469 = vpop.f32.mrb[0].mxu0
  %v1470 = vpop.f32.mrb[0].mxu0
  %1471 = vdwg.mxu0
  %v1488 = vunpack.c.l.b16 %v1040
  %v1489 = vunpack.c.l.b16 %v1041
  %v1490 = vunpack.c.l.b16 %v1042
  %v1491 = vunpack.c.l.b16 %v1043
  %v1492 = vunpack.c.l.b16 %v1044
  %v1493 = vunpack.c.l.b16 %v1045
  %v1494 = vunpack.c.l.b16 %v1046
  %v1495 = vunpack.c.l.b16 %v1047
  %v1496 = vunpack.c.l.b16 %v1048
  %v1497 = vunpack.c.l.b16 %v1049
  %v1498 = vunpack.c.l.b16 %v1050
  %v1499 = vunpack.c.l.b16 %v1051
  %v1500 = vunpack.c.l.b16 %v1052
  %v1501 = vunpack.c.l.b16 %v1053
  %v1502 = vunpack.c.l.b16 %v1054
  %v1503 = vunpack.c.l.b16 %v1055
  %v1504 = vpack.c.b16 %v1489, %v1488
  %v1505 = vpack.c.b16 %v1491, %v1490
  %v1506 = vpack.c.b16 %v1493, %v1492
  %v1507 = vpack.c.b16 %v1495, %v1494
  %v1508 = vpack.c.b16 %v1497, %v1496
  %v1509 = vpack.c.b16 %v1499, %v1498
  %v1510 = vpack.c.b16 %v1501, %v1500
  %v1511 = vpack.c.b16 %v1503, %v1502
  %1520 = vmatprep.subr.bf16.mxu0 0
  %1521 = vmatpush1.bf16.msra.mxu0 %v1504
  %1522 = vmatprep.subr.bf16.mxu0 0
  %1523 = vmatpush1.bf16.msra.mxu0 %v1505
  %1524 = vmatprep.subr.bf16.mxu0 0
  %1525 = vmatpush1.bf16.msra.mxu0 %v1506
  %1526 = vmatprep.subr.bf16.mxu0 0
  %1527 = vmatpush1.bf16.msra.mxu0 %v1507
  %1528 = vmatprep.subr.bf16.mxu0 0
  %1529 = vmatpush1.bf16.msra.mxu0 %v1508
  %1530 = vmatprep.subr.bf16.mxu0 0
  %1531 = vmatpush1.bf16.msra.mxu0 %v1509
  %1532 = vmatprep.subr.bf16.mxu0 0
  %1533 = vmatpush1.bf16.msra.mxu0 %v1510
  %1534 = vmatprep.subr.bf16.mxu0 0
  %1535 = vmatpush1.bf16.msra.mxu0 %v1511
  %1536 = vmatprep.subr.bf16.mxu0 0
  %1537 = vmatpush1.bf16.msra.mxu0 0
  %1538 = vmatprep.subr.bf16.mxu0 0
  %1539 = vmatpush1.bf16.msra.mxu0 0
  %1540 = vmatprep.subr.bf16.mxu0 0
  %1541 = vmatpush1.bf16.msra.mxu0 0
  %1542 = vmatprep.subr.bf16.mxu0 0
  %1543 = vmatpush1.bf16.msra.mxu0 0
  %1544 = vmatprep.subr.bf16.mxu0 0
  %1545 = vmatpush1.bf16.msra.mxu0 0
  %1546 = vmatprep.subr.bf16.mxu0 0
  %1547 = vmatpush1.bf16.msra.mxu0 0
  %1548 = vmatprep.subr.bf16.mxu0 0
  %1549 = vmatpush1.bf16.msra.mxu0 0
  %1550 = vmatprep.subr.bf16.mxu0 0
  %1551 = vmatpush1.bf16.msra.mxu0 0
  %1552 = vmatprep.mubr.bf16.mxu0 0
  %1553 = vmatmul.mubr.bf16.gmra.mrb[0].mxu0 %v992
  %v1554 = vpop.f32.mrb[0].mxu0
  %v1555 = vadd.f32 0.0, %v1554
  %v1556 = vpop.f32.mrb[0].mxu0
  %v1557 = vpop.f32.mrb[0].mxu0
  %v1558 = vpop.f32.mrb[0].mxu0
  %1559 = vdwg.mxu0
  %v1576 = vunpack.c.l.b16 %v1056
  %v1577 = vunpack.c.l.b16 %v1057
  %v1578 = vunpack.c.l.b16 %v1058
  %v1579 = vunpack.c.l.b16 %v1059
  %v1580 = vunpack.c.l.b16 %v1060
  %v1581 = vunpack.c.l.b16 %v1061
  %v1582 = vunpack.c.l.b16 %v1062
  %v1583 = vunpack.c.l.b16 %v1063
  %v1584 = vunpack.c.l.b16 %v1064
  %v1585 = vunpack.c.l.b16 %v1065
  %v1586 = vunpack.c.l.b16 %v1066
  %v1587 = vunpack.c.l.b16 %v1067
  %v1588 = vunpack.c.l.b16 %v1068
  %v1589 = vunpack.c.l.b16 %v1069
  %v1590 = vunpack.c.l.b16 %v1070
  %v1591 = vunpack.c.l.b16 %v1071
  %v1592 = vpack.c.b16 %v1577, %v1576
  %v1593 = vpack.c.b16 %v1579, %v1578
  %v1594 = vpack.c.b16 %v1581, %v1580
  %v1595 = vpack.c.b16 %v1583, %v1582
  %v1596 = vpack.c.b16 %v1585, %v1584
  %v1597 = vpack.c.b16 %v1587, %v1586
  %v1598 = vpack.c.b16 %v1589, %v1588
  %v1599 = vpack.c.b16 %v1591, %v1590
  %1608 = vmatprep.subr.bf16.mxu0 0
  %1609 = vmatpush1.bf16.msra.mxu0 %v1592
  %1610 = vmatprep.subr.bf16.mxu0 0
  %1611 = vmatpush1.bf16.msra.mxu0 %v1593
  %1612 = vmatprep.subr.bf16.mxu0 0
  %1613 = vmatpush1.bf16.msra.mxu0 %v1594
  %1614 = vmatprep.subr.bf16.mxu0 0
  %1615 = vmatpush1.bf16.msra.mxu0 %v1595
  %1616 = vmatprep.subr.bf16.mxu0 0
  %1617 = vmatpush1.bf16.msra.mxu0 %v1596
  %1618 = vmatprep.subr.bf16.mxu0 0
  %1619 = vmatpush1.bf16.msra.mxu0 %v1597
  %1620 = vmatprep.subr.bf16.mxu0 0
  %1621 = vmatpush1.bf16.msra.mxu0 %v1598
  %1622 = vmatprep.subr.bf16.mxu0 0
  %1623 = vmatpush1.bf16.msra.mxu0 %v1599
  %1624 = vmatprep.subr.bf16.mxu0 0
  %1625 = vmatpush1.bf16.msra.mxu0 0
  %1626 = vmatprep.subr.bf16.mxu0 0
  %1627 = vmatpush1.bf16.msra.mxu0 0
  %1628 = vmatprep.subr.bf16.mxu0 0
  %1629 = vmatpush1.bf16.msra.mxu0 0
  %1630 = vmatprep.subr.bf16.mxu0 0
  %1631 = vmatpush1.bf16.msra.mxu0 0
  %1632 = vmatprep.subr.bf16.mxu0 0
  %1633 = vmatpush1.bf16.msra.mxu0 0
  %1634 = vmatprep.subr.bf16.mxu0 0
  %1635 = vmatpush1.bf16.msra.mxu0 0
  %1636 = vmatprep.subr.bf16.mxu0 0
  %1637 = vmatpush1.bf16.msra.mxu0 0
  %1638 = vmatprep.subr.bf16.mxu0 0
  %1639 = vmatpush1.bf16.msra.mxu0 0
  %1640 = vmatprep.mubr.bf16.mxu0 0
  %1641 = vmatmul.mubr.bf16.gmra.mrb[0].mxu0 %v993
  %v1642 = vpop.f32.mrb[0].mxu0
  %v1643 = vadd.f32 0.0, %v1642
  %v1644 = vpop.f32.mrb[0].mxu0
  %v1645 = vpop.f32.mrb[0].mxu0
  %v1646 = vpop.f32.mrb[0].mxu0
  %1647 = vdwg.mxu0
  %v1664 = vunpack.c.l.b16 %v1072
  %v1665 = vunpack.c.l.b16 %v1073
  %v1666 = vunpack.c.l.b16 %v1074
  %v1667 = vunpack.c.l.b16 %v1075
  %v1668 = vunpack.c.l.b16 %v1076
  %v1669 = vunpack.c.l.b16 %v1077
  %v1670 = vunpack.c.l.b16 %v1078
  %v1671 = vunpack.c.l.b16 %v1079
  %v1672 = vunpack.c.l.b16 %v1080
  %v1673 = vunpack.c.l.b16 %v1081
  %v1674 = vunpack.c.l.b16 %v1082
  %v1675 = vunpack.c.l.b16 %v1083
  %v1676 = vunpack.c.l.b16 %v1084
  %v1677 = vunpack.c.l.b16 %v1085
  %v1678 = vunpack.c.l.b16 %v1086
  %v1679 = vunpack.c.l.b16 %v1087
  %v1680 = vpack.c.b16 %v1665, %v1664
  %v1681 = vpack.c.b16 %v1667, %v1666
  %v1682 = vpack.c.b16 %v1669, %v1668
  %v1683 = vpack.c.b16 %v1671, %v1670
  %v1684 = vpack.c.b16 %v1673, %v1672
  %v1685 = vpack.c.b16 %v1675, %v1674
  %v1686 = vpack.c.b16 %v1677, %v1676
  %v1687 = vpack.c.b16 %v1679, %v1678
  %1696 = vmatprep.subr.bf16.mxu0 0
  %1697 = vmatpush1.bf16.msra.mxu0 %v1680
  %1698 = vmatprep.subr.bf16.mxu0 0
  %1699 = vmatpush1.bf16.msra.mxu0 %v1681
  %1700 = vmatprep.subr.bf16.mxu0 0
  %1701 = vmatpush1.bf16.msra.mxu0 %v1682
  %1702 = vmatprep.subr.bf16.mxu0 0
  %1703 = vmatpush1.bf16.msra.mxu0 %v1683
  %1704 = vmatprep.subr.bf16.mxu0 0
  %1705 = vmatpush1.bf16.msra.mxu0 %v1684
  %1706 = vmatprep.subr.bf16.mxu0 0
  %1707 = vmatpush1.bf16.msra.mxu0 %v1685
  %1708 = vmatprep.subr.bf16.mxu0 0
  %1709 = vmatpush1.bf16.msra.mxu0 %v1686
  %1710 = vmatprep.subr.bf16.mxu0 0
  %1711 = vmatpush1.bf16.msra.mxu0 %v1687
  %1712 = vmatprep.subr.bf16.mxu0 0
  %1713 = vmatpush1.bf16.msra.mxu0 0
  %1714 = vmatprep.subr.bf16.mxu0 0
  %1715 = vmatpush1.bf16.msra.mxu0 0
  %1716 = vmatprep.subr.bf16.mxu0 0
  %1717 = vmatpush1.bf16.msra.mxu0 0
  %1718 = vmatprep.subr.bf16.mxu0 0
  %1719 = vmatpush1.bf16.msra.mxu0 0
  %1720 = vmatprep.subr.bf16.mxu0 0
  %1721 = vmatpush1.bf16.msra.mxu0 0
  %1722 = vmatprep.subr.bf16.mxu0 0
  %1723 = vmatpush1.bf16.msra.mxu0 0
  %1724 = vmatprep.subr.bf16.mxu0 0
  %1725 = vmatpush1.bf16.msra.mxu0 0
  %1726 = vmatprep.subr.bf16.mxu0 0
  %1727 = vmatpush1.bf16.msra.mxu0 0
  %1728 = vmatprep.mubr.bf16.mxu0 0
  %1729 = vmatmul.mubr.bf16.gmra.mrb[0].mxu0 %v994
  %v1730 = vpop.f32.mrb[0].mxu0
  %v1731 = vadd.f32 0.0, %v1730
  %v1732 = vpop.f32.mrb[0].mxu0
  %v1733 = vpop.f32.mrb[0].mxu0
  %v1734 = vpop.f32.mrb[0].mxu0
  %1735 = vdwg.mxu0
  %v1752 = vunpack.c.l.b16 %v1088
  %v1753 = vunpack.c.l.b16 %v1089
  %v1754 = vunpack.c.l.b16 %v1090
  %v1755 = vunpack.c.l.b16 %v1091
  %v1756 = vunpack.c.l.b16 %v1092
  %v1757 = vunpack.c.l.b16 %v1093
  %v1758 = vunpack.c.l.b16 %v1094
  %v1759 = vunpack.c.l.b16 %v1095
  %v1760 = vunpack.c.l.b16 %v1096
  %v1761 = vunpack.c.l.b16 %v1097
  %v1762 = vunpack.c.l.b16 %v1098
  %v1763 = vunpack.c.l.b16 %v1099
  %v1764 = vunpack.c.l.b16 %v1100
  %v1765 = vunpack.c.l.b16 %v1101
  %v1766 = vunpack.c.l.b16 %v1102
  %v1767 = vunpack.c.l.b16 %v1103
  %v1768 = vpack.c.b16 %v1753, %v1752
  %v1769 = vpack.c.b16 %v1755, %v1754
  %v1770 = vpack.c.b16 %v1757, %v1756
  %v1771 = vpack.c.b16 %v1759, %v1758
  %v1772 = vpack.c.b16 %v1761, %v1760
  %v1773 = vpack.c.b16 %v1763, %v1762
  %v1774 = vpack.c.b16 %v1765, %v1764
  %v1775 = vpack.c.b16 %v1767, %v1766
  %1784 = vmatprep.subr.bf16.mxu0 0
  %1785 = vmatpush1.bf16.msra.mxu0 %v1768
  %1786 = vmatprep.subr.bf16.mxu0 0
  %1787 = vmatpush1.bf16.msra.mxu0 %v1769
  %1788 = vmatprep.subr.bf16.mxu0 0
  %1789 = vmatpush1.bf16.msra.mxu0 %v1770
  %1790 = vmatprep.subr.bf16.mxu0 0
  %1791 = vmatpush1.bf16.msra.mxu0 %v1771
  %1792 = vmatprep.subr.bf16.mxu0 0
  %1793 = vmatpush1.bf16.msra.mxu0 %v1772
  %1794 = vmatprep.subr.bf16.mxu0 0
  %1795 = vmatpush1.bf16.msra.mxu0 %v1773
  %1796 = vmatprep.subr.bf16.mxu0 0
  %1797 = vmatpush1.bf16.msra.mxu0 %v1774
  %1798 = vmatprep.subr.bf16.mxu0 0
  %1799 = vmatpush1.bf16.msra.mxu0 %v1775
  %1800 = vmatprep.subr.bf16.mxu0 0
  %1801 = vmatpush1.bf16.msra.mxu0 0
  %1802 = vmatprep.subr.bf16.mxu0 0
  %1803 = vmatpush1.bf16.msra.mxu0 0
  %1804 = vmatprep.subr.bf16.mxu0 0
  %1805 = vmatpush1.bf16.msra.mxu0 0
  %1806 = vmatprep.subr.bf16.mxu0 0
  %1807 = vmatpush1.bf16.msra.mxu0 0
  %1808 = vmatprep.subr.bf16.mxu0 0
  %1809 = vmatpush1.bf16.msra.mxu0 0
  %1810 = vmatprep.subr.bf16.mxu0 0
  %1811 = vmatpush1.bf16.msra.mxu0 0
  %1812 = vmatprep.subr.bf16.mxu0 0
  %1813 = vmatpush1.bf16.msra.mxu0 0
  %1814 = vmatprep.subr.bf16.mxu0 0
  %1815 = vmatpush1.bf16.msra.mxu0 0
  %1816 = vmatprep.mubr.bf16.mxu0 0
  %1817 = vmatmul.mubr.bf16.gmra.mrb[0].mxu0 %v995
  %v1818 = vpop.f32.mrb[0].mxu0
  %v1819 = vadd.f32 0.0, %v1818
  %v1820 = vpop.f32.mrb[0].mxu0
  %v1821 = vpop.f32.mrb[0].mxu0
  %v1822 = vpop.f32.mrb[0].mxu0
  %1823 = vdwg.mxu0
  %v1840 = vunpack.c.l.b16 %v1104
  %v1841 = vunpack.c.l.b16 %v1105
  %v1842 = vunpack.c.l.b16 %v1106
  %v1843 = vunpack.c.l.b16 %v1107
  %v1844 = vunpack.c.l.b16 %v1108
  %v1845 = vunpack.c.l.b16 %v1109
  %v1846 = vunpack.c.l.b16 %v1110
  %v1847 = vunpack.c.l.b16 %v1111
  %v1848 = vunpack.c.l.b16 %v1112
  %v1849 = vunpack.c.l.b16 %v1113
  %v1850 = vunpack.c.l.b16 %v1114
  %v1851 = vunpack.c.l.b16 %v1115
  %v1852 = vunpack.c.l.b16 %v1116
  %v1853 = vunpack.c.l.b16 %v1117
  %v1854 = vunpack.c.l.b16 %v1118
  %v1855 = vunpack.c.l.b16 %v1119
  %v1856 = vpack.c.b16 %v1841, %v1840
  %v1857 = vpack.c.b16 %v1843, %v1842
  %v1858 = vpack.c.b16 %v1845, %v1844
  %v1859 = vpack.c.b16 %v1847, %v1846
  %v1860 = vpack.c.b16 %v1849, %v1848
  %v1861 = vpack.c.b16 %v1851, %v1850
  %v1862 = vpack.c.b16 %v1853, %v1852
  %v1863 = vpack.c.b16 %v1855, %v1854
  %1872 = vmatprep.subr.bf16.mxu0 0
  %1873 = vmatpush1.bf16.msra.mxu0 %v1856
  %1874 = vmatprep.subr.bf16.mxu0 0
  %1875 = vmatpush1.bf16.msra.mxu0 %v1857
  %1876 = vmatprep.subr.bf16.mxu0 0
  %1877 = vmatpush1.bf16.msra.mxu0 %v1858
  %1878 = vmatprep.subr.bf16.mxu0 0
  %1879 = vmatpush1.bf16.msra.mxu0 %v1859
  %1880 = vmatprep.subr.bf16.mxu0 0
  %1881 = vmatpush1.bf16.msra.mxu0 %v1860
  %1882 = vmatprep.subr.bf16.mxu0 0
  %1883 = vmatpush1.bf16.msra.mxu0 %v1861
  %1884 = vmatprep.subr.bf16.mxu0 0
  %1885 = vmatpush1.bf16.msra.mxu0 %v1862
  %1886 = vmatprep.subr.bf16.mxu0 0
  %1887 = vmatpush1.bf16.msra.mxu0 %v1863
  %1888 = vmatprep.subr.bf16.mxu0 0
  %1889 = vmatpush1.bf16.msra.mxu0 0
  %1890 = vmatprep.subr.bf16.mxu0 0
  %1891 = vmatpush1.bf16.msra.mxu0 0
  %1892 = vmatprep.subr.bf16.mxu0 0
  %1893 = vmatpush1.bf16.msra.mxu0 0
  %1894 = vmatprep.subr.bf16.mxu0 0
  %1895 = vmatpush1.bf16.msra.mxu0 0
  %1896 = vmatprep.subr.bf16.mxu0 0
  %1897 = vmatpush1.bf16.msra.mxu0 0
  %1898 = vmatprep.subr.bf16.mxu0 0
  %1899 = vmatpush1.bf16.msra.mxu0 0
  %1900 = vmatprep.subr.bf16.mxu0 0
  %1901 = vmatpush1.bf16.msra.mxu0 0
  %1902 = vmatprep.subr.bf16.mxu0 0
  %1903 = vmatpush1.bf16.msra.mxu0 0
  %1904 = vmatprep.mubr.bf16.mxu0 0
  %1905 = vmatmul.mubr.bf16.gmra.mrb[0].mxu0 %v996
  %v1906 = vpop.f32.mrb[0].mxu0
  %v1907 = vadd.f32 0.0, %v1906
  %v1908 = vpop.f32.mrb[0].mxu0
  %v1909 = vpop.f32.mrb[0].mxu0
  %v1910 = vpop.f32.mrb[0].mxu0
  %1911 = vdwg.mxu0
  %v1928 = vunpack.c.l.b16 %v1120
  %v1929 = vunpack.c.l.b16 %v1121
  %v1930 = vunpack.c.l.b16 %v1122
  %v1931 = vunpack.c.l.b16 %v1123
  %v1932 = vunpack.c.l.b16 %v1124
  %v1933 = vunpack.c.l.b16 %v1125
  %v1934 = vunpack.c.l.b16 %v1126
  %v1935 = vunpack.c.l.b16 %v1127
  %v1936 = vunpack.c.l.b16 %v1128
  %v1937 = vunpack.c.l.b16 %v1129
  %v1938 = vunpack.c.l.b16 %v1130
  %v1939 = vunpack.c.l.b16 %v1131
  %v1940 = vunpack.c.l.b16 %v1132
  %v1941 = vunpack.c.l.b16 %v1133
  %v1942 = vunpack.c.l.b16 %v1134
  %v1943 = vunpack.c.l.b16 %v1135
  %v1944 = vpack.c.b16 %v1929, %v1928
  %v1945 = vpack.c.b16 %v1931, %v1930
  %v1946 = vpack.c.b16 %v1933, %v1932
  %v1947 = vpack.c.b16 %v1935, %v1934
  %v1948 = vpack.c.b16 %v1937, %v1936
  %v1949 = vpack.c.b16 %v1939, %v1938
  %v1950 = vpack.c.b16 %v1941, %v1940
  %v1951 = vpack.c.b16 %v1943, %v1942
  %1960 = vmatprep.subr.bf16.mxu0 0
  %1961 = vmatpush1.bf16.msra.mxu0 %v1944
  %1962 = vmatprep.subr.bf16.mxu0 0
  %1963 = vmatpush1.bf16.msra.mxu0 %v1945
  %1964 = vmatprep.subr.bf16.mxu0 0
  %1965 = vmatpush1.bf16.msra.mxu0 %v1946
  %1966 = vmatprep.subr.bf16.mxu0 0
  %1967 = vmatpush1.bf16.msra.mxu0 %v1947
  %1968 = vmatprep.subr.bf16.mxu0 0
  %1969 = vmatpush1.bf16.msra.mxu0 %v1948
  %1970 = vmatprep.subr.bf16.mxu0 0
  %1971 = vmatpush1.bf16.msra.mxu0 %v1949
  %1972 = vmatprep.subr.bf16.mxu0 0
  %1973 = vmatpush1.bf16.msra.mxu0 %v1950
  %1974 = vmatprep.subr.bf16.mxu0 0
  %1975 = vmatpush1.bf16.msra.mxu0 %v1951
  %1976 = vmatprep.subr.bf16.mxu0 0
  %1977 = vmatpush1.bf16.msra.mxu0 0
  %1978 = vmatprep.subr.bf16.mxu0 0
  %1979 = vmatpush1.bf16.msra.mxu0 0
  %1980 = vmatprep.subr.bf16.mxu0 0
  %1981 = vmatpush1.bf16.msra.mxu0 0
  %1982 = vmatprep.subr.bf16.mxu0 0
  %1983 = vmatpush1.bf16.msra.mxu0 0
  %1984 = vmatprep.subr.bf16.mxu0 0
  %1985 = vmatpush1.bf16.msra.mxu0 0
  %1986 = vmatprep.subr.bf16.mxu0 0
  %1987 = vmatpush1.bf16.msra.mxu0 0
  %1988 = vmatprep.subr.bf16.mxu0 0
  %1989 = vmatpush1.bf16.msra.mxu0 0
  %1990 = vmatprep.subr.bf16.mxu0 0
  %1991 = vmatpush1.bf16.msra.mxu0 0
  %1992 = vmatprep.mubr.bf16.mxu0 0
  %1993 = vmatmul.mubr.bf16.gmra.mrb[0].mxu0 %v997
  %v1994 = vpop.f32.mrb[0].mxu0
  %v1995 = vadd.f32 0.0, %v1994
  %v1996 = vpop.f32.mrb[0].mxu0
  %v1997 = vpop.f32.mrb[0].mxu0
  %v1998 = vpop.f32.mrb[0].mxu0
  %1999 = vdwg.mxu0
  %v2016 = vunpack.c.l.b16 %v1136
  %v2017 = vunpack.c.l.b16 %v1137
  %v2018 = vunpack.c.l.b16 %v1138
  %v2019 = vunpack.c.l.b16 %v1139
  %v2020 = vunpack.c.l.b16 %v1140
  %v2021 = vunpack.c.l.b16 %v1141
  %v2022 = vunpack.c.l.b16 %v1142
  %v2023 = vunpack.c.l.b16 %v1143
  %v2024 = vunpack.c.l.b16 %v1144
  %v2025 = vunpack.c.l.b16 %v1145
  %v2026 = vunpack.c.l.b16 %v1146
  %v2027 = vunpack.c.l.b16 %v1147
  %v2028 = vunpack.c.l.b16 %v1148
  %v2029 = vunpack.c.l.b16 %v1149
  %v2030 = vunpack.c.l.b16 %v1150
  %v2031 = vunpack.c.l.b16 %v1151
  %v2032 = vpack.c.b16 %v2017, %v2016
  %v2033 = vpack.c.b16 %v2019, %v2018
  %v2034 = vpack.c.b16 %v2021, %v2020
  %v2035 = vpack.c.b16 %v2023, %v2022
  %v2036 = vpack.c.b16 %v2025, %v2024
  %v2037 = vpack.c.b16 %v2027, %v2026
  %v2038 = vpack.c.b16 %v2029, %v2028
  %v2039 = vpack.c.b16 %v2031, %v2030
  %2048 = vmatprep.subr.bf16.mxu0 0
  %2049 = vmatpush1.bf16.msra.mxu0 %v2032
  %2050 = vmatprep.subr.bf16.mxu0 0
  %2051 = vmatpush1.bf16.msra.mxu0 %v2033
  %2052 = vmatprep.subr.bf16.mxu0 0
  %2053 = vmatpush1.bf16.msra.mxu0 %v2034
  %2054 = vmatprep.subr.bf16.mxu0 0
  %2055 = vmatpush1.bf16.msra.mxu0 %v2035
  %2056 = vmatprep.subr.bf16.mxu0 0
  %2057 = vmatpush1.bf16.msra.mxu0 %v2036
  %2058 = vmatprep.subr.bf16.mxu0 0
  %2059 = vmatpush1.bf16.msra.mxu0 %v2037
  %2060 = vmatprep.subr.bf16.mxu0 0
  %2061 = vmatpush1.bf16.msra.mxu0 %v2038
  %2062 = vmatprep.subr.bf16.mxu0 0
  %2063 = vmatpush1.bf16.msra.mxu0 %v2039
  %2064 = vmatprep.subr.bf16.mxu0 0
  %2065 = vmatpush1.bf16.msra.mxu0 0
  %2066 = vmatprep.subr.bf16.mxu0 0
  %2067 = vmatpush1.bf16.msra.mxu0 0
  %2068 = vmatprep.subr.bf16.mxu0 0
  %2069 = vmatpush1.bf16.msra.mxu0 0
  %2070 = vmatprep.subr.bf16.mxu0 0
  %2071 = vmatpush1.bf16.msra.mxu0 0
  %2072 = vmatprep.subr.bf16.mxu0 0
  %2073 = vmatpush1.bf16.msra.mxu0 0
  %2074 = vmatprep.subr.bf16.mxu0 0
  %2075 = vmatpush1.bf16.msra.mxu0 0
  %2076 = vmatprep.subr.bf16.mxu0 0
  %2077 = vmatpush1.bf16.msra.mxu0 0
  %2078 = vmatprep.subr.bf16.mxu0 0
  %2079 = vmatpush1.bf16.msra.mxu0 0
  %2080 = vmatprep.mubr.bf16.mxu0 0
  %2081 = vmatmul.mubr.bf16.gmra.mrb[0].mxu0 %v998
  %v2082 = vpop.f32.mrb[0].mxu0
  %v2083 = vadd.f32 0.0, %v2082
  %v2084 = vpop.f32.mrb[0].mxu0
  %v2085 = vpop.f32.mrb[0].mxu0
  %v2086 = vpop.f32.mrb[0].mxu0
  %2087 = vdwg.mxu0
  %v2104 = vunpack.c.l.b16 %v1152
  %v2105 = vunpack.c.l.b16 %v1153
  %v2106 = vunpack.c.l.b16 %v1154
  %v2107 = vunpack.c.l.b16 %v1155
  %v2108 = vunpack.c.l.b16 %v1156
  %v2109 = vunpack.c.l.b16 %v1157
  %v2110 = vunpack.c.l.b16 %v1158
  %v2111 = vunpack.c.l.b16 %v1159
  %v2112 = vunpack.c.l.b16 %v1160
  %v2113 = vunpack.c.l.b16 %v1161
  %v2114 = vunpack.c.l.b16 %v1162
  %v2115 = vunpack.c.l.b16 %v1163
  %v2116 = vunpack.c.l.b16 %v1164
  %v2117 = vunpack.c.l.b16 %v1165
  %v2118 = vunpack.c.l.b16 %v1166
  %v2119 = vunpack.c.l.b16 %v1167
  %v2120 = vpack.c.b16 %v2105, %v2104
  %v2121 = vpack.c.b16 %v2107, %v2106
  %v2122 = vpack.c.b16 %v2109, %v2108
  %v2123 = vpack.c.b16 %v2111, %v2110
  %v2124 = vpack.c.b16 %v2113, %v2112
  %v2125 = vpack.c.b16 %v2115, %v2114
  %v2126 = vpack.c.b16 %v2117, %v2116
  %v2127 = vpack.c.b16 %v2119, %v2118
  %2136 = vmatprep.subr.bf16.mxu0 0
  %2137 = vmatpush1.bf16.msra.mxu0 %v2120
  %2138 = vmatprep.subr.bf16.mxu0 0
  %2139 = vmatpush1.bf16.msra.mxu0 %v2121
  %2140 = vmatprep.subr.bf16.mxu0 0
  %2141 = vmatpush1.bf16.msra.mxu0 %v2122
  %2142 = vmatprep.subr.bf16.mxu0 0
  %2143 = vmatpush1.bf16.msra.mxu0 %v2123
  %2144 = vmatprep.subr.bf16.mxu0 0
  %2145 = vmatpush1.bf16.msra.mxu0 %v2124
  %2146 = vmatprep.subr.bf16.mxu0 0
  %2147 = vmatpush1.bf16.msra.mxu0 %v2125
  %2148 = vmatprep.subr.bf16.mxu0 0
  %2149 = vmatpush1.bf16.msra.mxu0 %v2126
  %2150 = vmatprep.subr.bf16.mxu0 0
  %2151 = vmatpush1.bf16.msra.mxu0 %v2127
  %2152 = vmatprep.subr.bf16.mxu0 0
  %2153 = vmatpush1.bf16.msra.mxu0 0
  %2154 = vmatprep.subr.bf16.mxu0 0
  %2155 = vmatpush1.bf16.msra.mxu0 0
  %2156 = vmatprep.subr.bf16.mxu0 0
  %2157 = vmatpush1.bf16.msra.mxu0 0
  %2158 = vmatprep.subr.bf16.mxu0 0
  %2159 = vmatpush1.bf16.msra.mxu0 0
  %2160 = vmatprep.subr.bf16.mxu0 0
  %2161 = vmatpush1.bf16.msra.mxu0 0
  %2162 = vmatprep.subr.bf16.mxu0 0
  %2163 = vmatpush1.bf16.msra.mxu0 0
  %2164 = vmatprep.subr.bf16.mxu0 0
  %2165 = vmatpush1.bf16.msra.mxu0 0
  %2166 = vmatprep.subr.bf16.mxu0 0
  %2167 = vmatpush1.bf16.msra.mxu0 0
  %2168 = vmatprep.mubr.bf16.mxu0 0
  %2169 = vmatmul.mubr.bf16.gmra.mrb[0].mxu0 %v999
  %v2170 = vpop.f32.mrb[0].mxu0
  %v2171 = vadd.f32 0.0, %v2170
  %v2172 = vpop.f32.mrb[0].mxu0
  %v2173 = vpop.f32.mrb[0].mxu0
  %v2174 = vpop.f32.mrb[0].mxu0
  %2175 = vdwg.mxu0
  %v2192 = vunpack.c.l.b16 %v1168
  %v2193 = vunpack.c.l.b16 %v1169
  %v2194 = vunpack.c.l.b16 %v1170
  %v2195 = vunpack.c.l.b16 %v1171
  %v2196 = vunpack.c.l.b16 %v1172
  %v2197 = vunpack.c.l.b16 %v1173
  %v2198 = vunpack.c.l.b16 %v1174
  %v2199 = vunpack.c.l.b16 %v1175
  %v2200 = vunpack.c.l.b16 %v1176
  %v2201 = vunpack.c.l.b16 %v1177
  %v2202 = vunpack.c.l.b16 %v1178
  %v2203 = vunpack.c.l.b16 %v1179
  %v2204 = vunpack.c.l.b16 %v1180
  %v2205 = vunpack.c.l.b16 %v1181
  %v2206 = vunpack.c.l.b16 %v1182
  %v2207 = vunpack.c.l.b16 %v1183
  %v2208 = vpack.c.b16 %v2193, %v2192
  %v2209 = vpack.c.b16 %v2195, %v2194
  %v2210 = vpack.c.b16 %v2197, %v2196
  %v2211 = vpack.c.b16 %v2199, %v2198
  %v2212 = vpack.c.b16 %v2201, %v2200
  %v2213 = vpack.c.b16 %v2203, %v2202
  %v2214 = vpack.c.b16 %v2205, %v2204
  %v2215 = vpack.c.b16 %v2207, %v2206
  %2224 = vmatprep.subr.bf16.mxu0 0
  %2225 = vmatpush1.bf16.msra.mxu0 %v2208
  %2226 = vmatprep.subr.bf16.mxu0 0
  %2227 = vmatpush1.bf16.msra.mxu0 %v2209
  %2228 = vmatprep.subr.bf16.mxu0 0
  %2229 = vmatpush1.bf16.msra.mxu0 %v2210
  %2230 = vmatprep.subr.bf16.mxu0 0
  %2231 = vmatpush1.bf16.msra.mxu0 %v2211
  %2232 = vmatprep.subr.bf16.mxu0 0
  %2233 = vmatpush1.bf16.msra.mxu0 %v2212
  %2234 = vmatprep.subr.bf16.mxu0 0
  %2235 = vmatpush1.bf16.msra.mxu0 %v2213
  %2236 = vmatprep.subr.bf16.mxu0 0
  %2237 = vmatpush1.bf16.msra.mxu0 %v2214
  %2238 = vmatprep.subr.bf16.mxu0 0
  %2239 = vmatpush1.bf16.msra.mxu0 %v2215
  %2240 = vmatprep.subr.bf16.mxu0 0
  %2241 = vmatpush1.bf16.msra.mxu0 0
  %2242 = vmatprep.subr.bf16.mxu0 0
  %2243 = vmatpush1.bf16.msra.mxu0 0
  %2244 = vmatprep.subr.bf16.mxu0 0
  %2245 = vmatpush1.bf16.msra.mxu0 0
  %2246 = vmatprep.subr.bf16.mxu0 0
  %2247 = vmatpush1.bf16.msra.mxu0 0
  %2248 = vmatprep.subr.bf16.mxu0 0
  %2249 = vmatpush1.bf16.msra.mxu0 0
  %2250 = vmatprep.subr.bf16.mxu0 0
  %2251 = vmatpush1.bf16.msra.mxu0 0
  %2252 = vmatprep.subr.bf16.mxu0 0
  %2253 = vmatpush1.bf16.msra.mxu0 0
  %2254 = vmatprep.subr.bf16.mxu0 0
  %2255 = vmatpush1.bf16.msra.mxu0 0
  %2256 = vmatprep.mubr.bf16.mxu0 0
  %2257 = vmatmul.mubr.bf16.gmra.mrb[0].mxu0 %v1000
  %v2258 = vpop.f32.mrb[0].mxu0
  %v2259 = vadd.f32 0.0, %v2258
  %v2260 = vpop.f32.mrb[0].mxu0
  %v2261 = vpop.f32.mrb[0].mxu0
  %v2262 = vpop.f32.mrb[0].mxu0
  %2263 = vdwg.mxu0
  %v2280 = vunpack.c.l.b16 %v1184
  %v2281 = vunpack.c.l.b16 %v1185
  %v2282 = vunpack.c.l.b16 %v1186
  %v2283 = vunpack.c.l.b16 %v1187
  %v2284 = vunpack.c.l.b16 %v1188
  %v2285 = vunpack.c.l.b16 %v1189
  %v2286 = vunpack.c.l.b16 %v1190
  %v2287 = vunpack.c.l.b16 %v1191
  %v2288 = vunpack.c.l.b16 %v1192
  %v2289 = vunpack.c.l.b16 %v1193
  %v2290 = vunpack.c.l.b16 %v1194
  %v2291 = vunpack.c.l.b16 %v1195
  %v2292 = vunpack.c.l.b16 %v1196
  %v2293 = vunpack.c.l.b16 %v1197
  %v2294 = vunpack.c.l.b16 %v1198
  %v2295 = vunpack.c.l.b16 %v1199
  %v2296 = vpack.c.b16 %v2281, %v2280
  %v2297 = vpack.c.b16 %v2283, %v2282
  %v2298 = vpack.c.b16 %v2285, %v2284
  %v2299 = vpack.c.b16 %v2287, %v2286
  %v2300 = vpack.c.b16 %v2289, %v2288
  %v2301 = vpack.c.b16 %v2291, %v2290
  %v2302 = vpack.c.b16 %v2293, %v2292
  %v2303 = vpack.c.b16 %v2295, %v2294
  %2312 = vmatprep.subr.bf16.mxu0 0
  %2313 = vmatpush1.bf16.msra.mxu0 %v2296
  %2314 = vmatprep.subr.bf16.mxu0 0
  %2315 = vmatpush1.bf16.msra.mxu0 %v2297
  %2316 = vmatprep.subr.bf16.mxu0 0
  %2317 = vmatpush1.bf16.msra.mxu0 %v2298
  %2318 = vmatprep.subr.bf16.mxu0 0
  %2319 = vmatpush1.bf16.msra.mxu0 %v2299
  %2320 = vmatprep.subr.bf16.mxu0 0
  %2321 = vmatpush1.bf16.msra.mxu0 %v2300
  %2322 = vmatprep.subr.bf16.mxu0 0
  %2323 = vmatpush1.bf16.msra.mxu0 %v2301
  %2324 = vmatprep.subr.bf16.mxu0 0
  %2325 = vmatpush1.bf16.msra.mxu0 %v2302
  %2326 = vmatprep.subr.bf16.mxu0 0
  %2327 = vmatpush1.bf16.msra.mxu0 %v2303
  %2328 = vmatprep.subr.bf16.mxu0 0
  %2329 = vmatpush1.bf16.msra.mxu0 0
  %2330 = vmatprep.subr.bf16.mxu0 0
  %2331 = vmatpush1.bf16.msra.mxu0 0
  %2332 = vmatprep.subr.bf16.mxu0 0
  %2333 = vmatpush1.bf16.msra.mxu0 0
  %2334 = vmatprep.subr.bf16.mxu0 0
  %2335 = vmatpush1.bf16.msra.mxu0 0
  %2336 = vmatprep.subr.bf16.mxu0 0
  %2337 = vmatpush1.bf16.msra.mxu0 0
  %2338 = vmatprep.subr.bf16.mxu0 0
  %2339 = vmatpush1.bf16.msra.mxu0 0
  %2340 = vmatprep.subr.bf16.mxu0 0
  %2341 = vmatpush1.bf16.msra.mxu0 0
  %2342 = vmatprep.subr.bf16.mxu0 0
  %2343 = vmatpush1.bf16.msra.mxu0 0
  %2344 = vmatprep.mubr.bf16.mxu0 0
  %2345 = vmatmul.mubr.bf16.gmra.mrb[0].mxu0 %v1001
  %v2346 = vpop.f32.mrb[0].mxu0
  %v2347 = vadd.f32 0.0, %v2346
  %v2348 = vpop.f32.mrb[0].mxu0
  %v2349 = vpop.f32.mrb[0].mxu0
  %v2350 = vpop.f32.mrb[0].mxu0
  %2351 = vdwg.mxu0
  %v2368 = vunpack.c.l.b16 %v1200
  %v2369 = vunpack.c.l.b16 %v1201
  %v2370 = vunpack.c.l.b16 %v1202
  %v2371 = vunpack.c.l.b16 %v1203
  %v2372 = vunpack.c.l.b16 %v1204
  %v2373 = vunpack.c.l.b16 %v1205
  %v2374 = vunpack.c.l.b16 %v1206
  %v2375 = vunpack.c.l.b16 %v1207
  %v2376 = vunpack.c.l.b16 %v1208
  %v2377 = vunpack.c.l.b16 %v1209
  %v2378 = vunpack.c.l.b16 %v1210
  %v2379 = vunpack.c.l.b16 %v1211
  %v2380 = vunpack.c.l.b16 %v1212
  %v2381 = vunpack.c.l.b16 %v1213
  %v2382 = vunpack.c.l.b16 %v1214
  %v2383 = vunpack.c.l.b16 %v1215
  %v2384 = vpack.c.b16 %v2369, %v2368
  %v2385 = vpack.c.b16 %v2371, %v2370
  %v2386 = vpack.c.b16 %v2373, %v2372
  %v2387 = vpack.c.b16 %v2375, %v2374
  %v2388 = vpack.c.b16 %v2377, %v2376
  %v2389 = vpack.c.b16 %v2379, %v2378
  %v2390 = vpack.c.b16 %v2381, %v2380
  %v2391 = vpack.c.b16 %v2383, %v2382
  %2400 = vmatprep.subr.bf16.mxu0 0
  %2401 = vmatpush1.bf16.msra.mxu0 %v2384
  %2402 = vmatprep.subr.bf16.mxu0 0
  %2403 = vmatpush1.bf16.msra.mxu0 %v2385
  %2404 = vmatprep.subr.bf16.mxu0 0
  %2405 = vmatpush1.bf16.msra.mxu0 %v2386
  %2406 = vmatprep.subr.bf16.mxu0 0
  %2407 = vmatpush1.bf16.msra.mxu0 %v2387
  %2408 = vmatprep.subr.bf16.mxu0 0
  %2409 = vmatpush1.bf16.msra.mxu0 %v2388
  %2410 = vmatprep.subr.bf16.mxu0 0
  %2411 = vmatpush1.bf16.msra.mxu0 %v2389
  %2412 = vmatprep.subr.bf16.mxu0 0
  %2413 = vmatpush1.bf16.msra.mxu0 %v2390
  %2414 = vmatprep.subr.bf16.mxu0 0
  %2415 = vmatpush1.bf16.msra.mxu0 %v2391
  %2416 = vmatprep.subr.bf16.mxu0 0
  %2417 = vmatpush1.bf16.msra.mxu0 0
  %2418 = vmatprep.subr.bf16.mxu0 0
  %2419 = vmatpush1.bf16.msra.mxu0 0
  %2420 = vmatprep.subr.bf16.mxu0 0
  %2421 = vmatpush1.bf16.msra.mxu0 0
  %2422 = vmatprep.subr.bf16.mxu0 0
  %2423 = vmatpush1.bf16.msra.mxu0 0
  %2424 = vmatprep.subr.bf16.mxu0 0
  %2425 = vmatpush1.bf16.msra.mxu0 0
  %2426 = vmatprep.subr.bf16.mxu0 0
  %2427 = vmatpush1.bf16.msra.mxu0 0
  %2428 = vmatprep.subr.bf16.mxu0 0
  %2429 = vmatpush1.bf16.msra.mxu0 0
  %2430 = vmatprep.subr.bf16.mxu0 0
  %2431 = vmatpush1.bf16.msra.mxu0 0
  %2432 = vmatprep.mubr.bf16.mxu0 0
  %2433 = vmatmul.mubr.bf16.gmra.mrb[0].mxu0 %v1002
  %v2434 = vpop.f32.mrb[0].mxu0
  %v2435 = vadd.f32 0.0, %v2434
  %v2436 = vpop.f32.mrb[0].mxu0
  %v2437 = vpop.f32.mrb[0].mxu0
  %v2438 = vpop.f32.mrb[0].mxu0
  %2439 = vdwg.mxu0
  %v2456 = vunpack.c.l.b16 %v1216
  %v2457 = vunpack.c.l.b16 %v1217
  %v2458 = vunpack.c.l.b16 %v1218
  %v2459 = vunpack.c.l.b16 %v1219
  %v2460 = vunpack.c.l.b16 %v1220
  %v2461 = vunpack.c.l.b16 %v1221
  %v2462 = vunpack.c.l.b16 %v1222
  %v2463 = vunpack.c.l.b16 %v1223
  %v2464 = vunpack.c.l.b16 %v1224
  %v2465 = vunpack.c.l.b16 %v1225
  %v2466 = vunpack.c.l.b16 %v1226
  %v2467 = vunpack.c.l.b16 %v1227
  %v2468 = vunpack.c.l.b16 %v1228
  %v2469 = vunpack.c.l.b16 %v1229
  %v2470 = vunpack.c.l.b16 %v1230
  %v2471 = vunpack.c.l.b16 %v1231
  %v2472 = vpack.c.b16 %v2457, %v2456
  %v2473 = vpack.c.b16 %v2459, %v2458
  %v2474 = vpack.c.b16 %v2461, %v2460
  %v2475 = vpack.c.b16 %v2463, %v2462
  %v2476 = vpack.c.b16 %v2465, %v2464
  %v2477 = vpack.c.b16 %v2467, %v2466
  %v2478 = vpack.c.b16 %v2469, %v2468
  %v2479 = vpack.c.b16 %v2471, %v2470
  %2488 = vmatprep.subr.bf16.mxu0 0
  %2489 = vmatpush1.bf16.msra.mxu0 %v2472
  %2490 = vmatprep.subr.bf16.mxu0 0
  %2491 = vmatpush1.bf16.msra.mxu0 %v2473
  %2492 = vmatprep.subr.bf16.mxu0 0
  %2493 = vmatpush1.bf16.msra.mxu0 %v2474
  %2494 = vmatprep.subr.bf16.mxu0 0
  %2495 = vmatpush1.bf16.msra.mxu0 %v2475
  %2496 = vmatprep.subr.bf16.mxu0 0
  %2497 = vmatpush1.bf16.msra.mxu0 %v2476
  %2498 = vmatprep.subr.bf16.mxu0 0
  %2499 = vmatpush1.bf16.msra.mxu0 %v2477
  %2500 = vmatprep.subr.bf16.mxu0 0
  %2501 = vmatpush1.bf16.msra.mxu0 %v2478
  %2502 = vmatprep.subr.bf16.mxu0 0
  %2503 = vmatpush1.bf16.msra.mxu0 %v2479
  %2504 = vmatprep.subr.bf16.mxu0 0
  %2505 = vmatpush1.bf16.msra.mxu0 0
  %2506 = vmatprep.subr.bf16.mxu0 0
  %2507 = vmatpush1.bf16.msra.mxu0 0
  %2508 = vmatprep.subr.bf16.mxu0 0
  %2509 = vmatpush1.bf16.msra.mxu0 0
  %2510 = vmatprep.subr.bf16.mxu0 0
  %2511 = vmatpush1.bf16.msra.mxu0 0
  %2512 = vmatprep.subr.bf16.mxu0 0
  %2513 = vmatpush1.bf16.msra.mxu0 0
  %2514 = vmatprep.subr.bf16.mxu0 0
  %2515 = vmatpush1.bf16.msra.mxu0 0
  %2516 = vmatprep.subr.bf16.mxu0 0
  %2517 = vmatpush1.bf16.msra.mxu0 0
  %2518 = vmatprep.subr.bf16.mxu0 0
  %2519 = vmatpush1.bf16.msra.mxu0 0
  %2520 = vmatprep.mubr.bf16.mxu0 0
  %2521 = vmatmul.mubr.bf16.gmra.mrb[0].mxu0 %v1003
  %v2522 = vpop.f32.mrb[0].mxu0
  %v2523 = vadd.f32 0.0, %v2522
  %v2524 = vpop.f32.mrb[0].mxu0
  %v2525 = vpop.f32.mrb[0].mxu0
  %v2526 = vpop.f32.mrb[0].mxu0
  %2527 = vdwg.mxu0
  %v2544 = vunpack.c.l.b16 %v1232
  %v2545 = vunpack.c.l.b16 %v1233
  %v2546 = vunpack.c.l.b16 %v1234
  %v2547 = vunpack.c.l.b16 %v1235
  %v2548 = vunpack.c.l.b16 %v1236
  %v2549 = vunpack.c.l.b16 %v1237
  %v2550 = vunpack.c.l.b16 %v1238
  %v2551 = vunpack.c.l.b16 %v1239
  %v2552 = vunpack.c.l.b16 %v1240
  %v2553 = vunpack.c.l.b16 %v1241
  %v2554 = vunpack.c.l.b16 %v1242
  %v2555 = vunpack.c.l.b16 %v1243
  %v2556 = vunpack.c.l.b16 %v1244
  %v2557 = vunpack.c.l.b16 %v1245
  %v2558 = vunpack.c.l.b16 %v1246
  %v2559 = vunpack.c.l.b16 %v1247
  %v2560 = vpack.c.b16 %v2545, %v2544
  %v2561 = vpack.c.b16 %v2547, %v2546
  %v2562 = vpack.c.b16 %v2549, %v2548
  %v2563 = vpack.c.b16 %v2551, %v2550
  %v2564 = vpack.c.b16 %v2553, %v2552
  %v2565 = vpack.c.b16 %v2555, %v2554
  %v2566 = vpack.c.b16 %v2557, %v2556
  %v2567 = vpack.c.b16 %v2559, %v2558
  %2576 = vmatprep.subr.bf16.mxu0 0
  %2577 = vmatpush1.bf16.msra.mxu0 %v2560
  %2578 = vmatprep.subr.bf16.mxu0 0
  %2579 = vmatpush1.bf16.msra.mxu0 %v2561
  %2580 = vmatprep.subr.bf16.mxu0 0
  %2581 = vmatpush1.bf16.msra.mxu0 %v2562
  %2582 = vmatprep.subr.bf16.mxu0 0
  %2583 = vmatpush1.bf16.msra.mxu0 %v2563
  %2584 = vmatprep.subr.bf16.mxu0 0
  %2585 = vmatpush1.bf16.msra.mxu0 %v2564
  %2586 = vmatprep.subr.bf16.mxu0 0
  %2587 = vmatpush1.bf16.msra.mxu0 %v2565
  %2588 = vmatprep.subr.bf16.mxu0 0
  %2589 = vmatpush1.bf16.msra.mxu0 %v2566
  %2590 = vmatprep.subr.bf16.mxu0 0
  %2591 = vmatpush1.bf16.msra.mxu0 %v2567
  %2592 = vmatprep.subr.bf16.mxu0 0
  %2593 = vmatpush1.bf16.msra.mxu0 0
  %2594 = vmatprep.subr.bf16.mxu0 0
  %2595 = vmatpush1.bf16.msra.mxu0 0
  %2596 = vmatprep.subr.bf16.mxu0 0
  %2597 = vmatpush1.bf16.msra.mxu0 0
  %2598 = vmatprep.subr.bf16.mxu0 0
  %2599 = vmatpush1.bf16.msra.mxu0 0
  %2600 = vmatprep.subr.bf16.mxu0 0
  %2601 = vmatpush1.bf16.msra.mxu0 0
  %2602 = vmatprep.subr.bf16.mxu0 0
  %2603 = vmatpush1.bf16.msra.mxu0 0
  %2604 = vmatprep.subr.bf16.mxu0 0
  %2605 = vmatpush1.bf16.msra.mxu0 0
  %2606 = vmatprep.subr.bf16.mxu0 0
  %2607 = vmatpush1.bf16.msra.mxu0 0
  %2608 = vmatprep.mubr.bf16.mxu0 0
  %2609 = vmatmul.mubr.bf16.gmra.mrb[0].mxu0 %v1004
  %v2610 = vpop.f32.mrb[0].mxu0
  %v2611 = vadd.f32 0.0, %v2610
  %v2612 = vpop.f32.mrb[0].mxu0
  %v2613 = vpop.f32.mrb[0].mxu0
  %v2614 = vpop.f32.mrb[0].mxu0
  %2615 = vdwg.mxu0
  %v2632 = vunpack.c.l.b16 %v1248
  %v2633 = vunpack.c.l.b16 %v1249
  %v2634 = vunpack.c.l.b16 %v1250
  %v2635 = vunpack.c.l.b16 %v1251
  %v2636 = vunpack.c.l.b16 %v1252
  %v2637 = vunpack.c.l.b16 %v1253
  %v2638 = vunpack.c.l.b16 %v1254
  %v2639 = vunpack.c.l.b16 %v1255
  %v2640 = vunpack.c.l.b16 %v1256
  %v2641 = vunpack.c.l.b16 %v1257
  %v2642 = vunpack.c.l.b16 %v1258
  %v2643 = vunpack.c.l.b16 %v1259
  %v2644 = vunpack.c.l.b16 %v1260
  %v2645 = vunpack.c.l.b16 %v1261
  %v2646 = vunpack.c.l.b16 %v1262
  %v2647 = vunpack.c.l.b16 %v1263
  %v2648 = vpack.c.b16 %v2633, %v2632
  %v2649 = vpack.c.b16 %v2635, %v2634
  %v2650 = vpack.c.b16 %v2637, %v2636
  %v2651 = vpack.c.b16 %v2639, %v2638
  %v2652 = vpack.c.b16 %v2641, %v2640
  %v2653 = vpack.c.b16 %v2643, %v2642
  %v2654 = vpack.c.b16 %v2645, %v2644
  %v2655 = vpack.c.b16 %v2647, %v2646
  %2664 = vmatprep.subr.bf16.mxu0 0
  %2665 = vmatpush1.bf16.msra.mxu0 %v2648
  %2666 = vmatprep.subr.bf16.mxu0 0
  %2667 = vmatpush1.bf16.msra.mxu0 %v2649
  %2668 = vmatprep.subr.bf16.mxu0 0
  %2669 = vmatpush1.bf16.msra.mxu0 %v2650
  %2670 = vmatprep.subr.bf16.mxu0 0
  %2671 = vmatpush1.bf16.msra.mxu0 %v2651
  %2672 = vmatprep.subr.bf16.mxu0 0
  %2673 = vmatpush1.bf16.msra.mxu0 %v2652
  %2674 = vmatprep.subr.bf16.mxu0 0
  %2675 = vmatpush1.bf16.msra.mxu0 %v2653
  %2676 = vmatprep.subr.bf16.mxu0 0
  %2677 = vmatpush1.bf16.msra.mxu0 %v2654
  %2678 = vmatprep.subr.bf16.mxu0 0
  %2679 = vmatpush1.bf16.msra.mxu0 %v2655
  %2680 = vmatprep.subr.bf16.mxu0 0
  %2681 = vmatpush1.bf16.msra.mxu0 0
  %2682 = vmatprep.subr.bf16.mxu0 0
  %2683 = vmatpush1.bf16.msra.mxu0 0
  %2684 = vmatprep.subr.bf16.mxu0 0
  %2685 = vmatpush1.bf16.msra.mxu0 0
  %2686 = vmatprep.subr.bf16.mxu0 0
  %2687 = vmatpush1.bf16.msra.mxu0 0
  %2688 = vmatprep.subr.bf16.mxu0 0
  %2689 = vmatpush1.bf16.msra.mxu0 0
  %2690 = vmatprep.subr.bf16.mxu0 0
  %2691 = vmatpush1.bf16.msra.mxu0 0
  %2692 = vmatprep.subr.bf16.mxu0 0
  %2693 = vmatpush1.bf16.msra.mxu0 0
  %2694 = vmatprep.subr.bf16.mxu0 0
  %2695 = vmatpush1.bf16.msra.mxu0 0
  %2696 = vmatprep.mubr.bf16.mxu0 0
  %2697 = vmatmul.mubr.bf16.gmra.mrb[0].mxu0 %v1005
  %v2698 = vpop.f32.mrb[0].mxu0
  %v2699 = vadd.f32 0.0, %v2698
  %v2700 = vpop.f32.mrb[0].mxu0
  %v2701 = vpop.f32.mrb[0].mxu0
  %v2702 = vpop.f32.mrb[0].mxu0
  %2703 = vdwg.mxu0
  %v2720 = vunpack.c.l.b16 %v1264
  %v2721 = vunpack.c.l.b16 %v1265
  %v2722 = vunpack.c.l.b16 %v1266
  %v2723 = vunpack.c.l.b16 %v1267
  %v2724 = vunpack.c.l.b16 %v1268
  %v2725 = vunpack.c.l.b16 %v1269
  %v2726 = vunpack.c.l.b16 %v1270
  %v2727 = vunpack.c.l.b16 %v1271
  %v2728 = vunpack.c.l.b16 %v1272
  %v2729 = vunpack.c.l.b16 %v1273
  %v2730 = vunpack.c.l.b16 %v1274
  %v2731 = vunpack.c.l.b16 %v1275
  %v2732 = vunpack.c.l.b16 %v1276
  %v2733 = vunpack.c.l.b16 %v1277
  %v2734 = vunpack.c.l.b16 %v1278
  %v2735 = vunpack.c.l.b16 %v1279
  %v2736 = vpack.c.b16 %v2721, %v2720
  %v2737 = vpack.c.b16 %v2723, %v2722
  %v2738 = vpack.c.b16 %v2725, %v2724
  %v2739 = vpack.c.b16 %v2727, %v2726
  %v2740 = vpack.c.b16 %v2729, %v2728
  %v2741 = vpack.c.b16 %v2731, %v2730
  %v2742 = vpack.c.b16 %v2733, %v2732
  %v2743 = vpack.c.b16 %v2735, %v2734
  %2752 = vmatprep.subr.bf16.mxu0 0
  %2753 = vmatpush1.bf16.msra.mxu0 %v2736
  %2754 = vmatprep.subr.bf16.mxu0 0
  %2755 = vmatpush1.bf16.msra.mxu0 %v2737
  %2756 = vmatprep.subr.bf16.mxu0 0
  %2757 = vmatpush1.bf16.msra.mxu0 %v2738
  %2758 = vmatprep.subr.bf16.mxu0 0
  %2759 = vmatpush1.bf16.msra.mxu0 %v2739
  %2760 = vmatprep.subr.bf16.mxu0 0
  %2761 = vmatpush1.bf16.msra.mxu0 %v2740
  %2762 = vmatprep.subr.bf16.mxu0 0
  %2763 = vmatpush1.bf16.msra.mxu0 %v2741
  %2764 = vmatprep.subr.bf16.mxu0 0
  %2765 = vmatpush1.bf16.msra.mxu0 %v2742
  %2766 = vmatprep.subr.bf16.mxu0 0
  %2767 = vmatpush1.bf16.msra.mxu0 %v2743
  %2768 = vmatprep.subr.bf16.mxu0 0
  %2769 = vmatpush1.bf16.msra.mxu0 0
  %2770 = vmatprep.subr.bf16.mxu0 0
  %2771 = vmatpush1.bf16.msra.mxu0 0
  %2772 = vmatprep.subr.bf16.mxu0 0
  %2773 = vmatpush1.bf16.msra.mxu0 0
  %2774 = vmatprep.subr.bf16.mxu0 0
  %2775 = vmatpush1.bf16.msra.mxu0 0
  %2776 = vmatprep.subr.bf16.mxu0 0
  %2777 = vmatpush1.bf16.msra.mxu0 0
  %2778 = vmatprep.subr.bf16.mxu0 0
  %2779 = vmatpush1.bf16.msra.mxu0 0
  %2780 = vmatprep.subr.bf16.mxu0 0
  %2781 = vmatpush1.bf16.msra.mxu0 0
  %2782 = vmatprep.subr.bf16.mxu0 0
  %2783 = vmatpush1.bf16.msra.mxu0 0
  %2784 = vmatprep.mubr.bf16.mxu0 0
  %2785 = vmatmul.mubr.bf16.gmra.mrb[0].mxu0 %v1006
  %v2786 = vpop.f32.mrb[0].mxu0
  %v2787 = vadd.f32 0.0, %v2786
  %v2788 = vpop.f32.mrb[0].mxu0
  %v2789 = vpop.f32.mrb[0].mxu0
  %v2790 = vpop.f32.mrb[0].mxu0
  %2791 = vdwg.mxu0
  %v2808 = vunpack.c.l.b16 %v1280
  %v2809 = vunpack.c.l.b16 %v1281
  %v2810 = vunpack.c.l.b16 %v1282
  %v2811 = vunpack.c.l.b16 %v1283
  %v2812 = vunpack.c.l.b16 %v1284
  %v2813 = vunpack.c.l.b16 %v1285
  %v2814 = vunpack.c.l.b16 %v1286
  %v2815 = vunpack.c.l.b16 %v1287
  %v2816 = vunpack.c.l.b16 %v1288
  %v2817 = vunpack.c.l.b16 %v1289
  %v2818 = vunpack.c.l.b16 %v1290
  %v2819 = vunpack.c.l.b16 %v1291
  %v2820 = vunpack.c.l.b16 %v1292
  %v2821 = vunpack.c.l.b16 %v1293
  %v2822 = vunpack.c.l.b16 %v1294
  %v2823 = vunpack.c.l.b16 %v1295
  %v2824 = vpack.c.b16 %v2809, %v2808
  %v2825 = vpack.c.b16 %v2811, %v2810
  %v2826 = vpack.c.b16 %v2813, %v2812
  %v2827 = vpack.c.b16 %v2815, %v2814
  %v2828 = vpack.c.b16 %v2817, %v2816
  %v2829 = vpack.c.b16 %v2819, %v2818
  %v2830 = vpack.c.b16 %v2821, %v2820
  %v2831 = vpack.c.b16 %v2823, %v2822
  %2840 = vmatprep.subr.bf16.mxu0 0
  %2841 = vmatpush1.bf16.msra.mxu0 %v2824
  %2842 = vmatprep.subr.bf16.mxu0 0
  %2843 = vmatpush1.bf16.msra.mxu0 %v2825
  %2844 = vmatprep.subr.bf16.mxu0 0
  %2845 = vmatpush1.bf16.msra.mxu0 %v2826
  %2846 = vmatprep.subr.bf16.mxu0 0
  %2847 = vmatpush1.bf16.msra.mxu0 %v2827
  %2848 = vmatprep.subr.bf16.mxu0 0
  %2849 = vmatpush1.bf16.msra.mxu0 %v2828
  %2850 = vmatprep.subr.bf16.mxu0 0
  %2851 = vmatpush1.bf16.msra.mxu0 %v2829
  %2852 = vmatprep.subr.bf16.mxu0 0
  %2853 = vmatpush1.bf16.msra.mxu0 %v2830
  %2854 = vmatprep.subr.bf16.mxu0 0
  %2855 = vmatpush1.bf16.msra.mxu0 %v2831
  %2856 = vmatprep.subr.bf16.mxu0 0
  %2857 = vmatpush1.bf16.msra.mxu0 0
  %2858 = vmatprep.subr.bf16.mxu0 0
  %2859 = vmatpush1.bf16.msra.mxu0 0
  %2860 = vmatprep.subr.bf16.mxu0 0
  %2861 = vmatpush1.bf16.msra.mxu0 0
  %2862 = vmatprep.subr.bf16.mxu0 0
  %2863 = vmatpush1.bf16.msra.mxu0 0
  %2864 = vmatprep.subr.bf16.mxu0 0
  %2865 = vmatpush1.bf16.msra.mxu0 0
  %2866 = vmatprep.subr.bf16.mxu0 0
  %2867 = vmatpush1.bf16.msra.mxu0 0
  %2868 = vmatprep.subr.bf16.mxu0 0
  %2869 = vmatpush1.bf16.msra.mxu0 0
  %2870 = vmatprep.subr.bf16.mxu0 0
  %2871 = vmatpush1.bf16.msra.mxu0 0
  %2872 = vmatprep.mubr.bf16.mxu0 0
  %2873 = vmatmul.mubr.bf16.gmra.mrb[0].mxu0 %v1007
  %v2874 = vpop.f32.mrb[0].mxu0
  %v2875 = vadd.f32 0.0, %v2874
  %v2876 = vpop.f32.mrb[0].mxu0
  %v2877 = vpop.f32.mrb[0].mxu0
  %v2878 = vpop.f32.mrb[0].mxu0
  %2879 = vdwg.mxu0
  %v2880 = vadd.f32 %v1379, %v1467
  %v2881 = vadd.f32 %v2880, %v1555
  %v2882 = vadd.f32 %v2881, %v1643
  %v2883 = vadd.f32 %v2882, %v1731
  %v2884 = vadd.f32 %v2883, %v1819
  %v2885 = vadd.f32 %v2884, %v1907
  %v2886 = vadd.f32 %v2885, %v1995
  %v2887 = vadd.f32 %v2886, %v2083
  %v2888 = vadd.f32 %v2887, %v2171
  %v2889 = vadd.f32 %v2888, %v2259
  %v2890 = vadd.f32 %v2889, %v2347
  %v2891 = vadd.f32 %v2890, %v2435
  %v2892 = vadd.f32 %v2891, %v2523
  %v2893 = vadd.f32 %v2892, %v2611
  %v2894 = vadd.f32 %v2893, %v2699
  %v2895 = vadd.f32 %v2894, %v2787
  %v2896 = vadd.f32 %v2895, %v2875
  %v2897 = vld [vmem:[%s6] sm:$0x1]
  %v2899 = vlaneseq
  %v2900 = vshrl.u32 %v2899, 7
  %v2901 = vsub.s32 0, %v2900
  %v2902 = vrot.slane %v2897, %v2901
  %v2904 = vadd.f32 %v2896, %v2902
  %v2905 = vmax.f32 %v2904, 0.0
  %2906 = vst [vmem:[%s7] sm:$0xff] %v2905
  // Predicated region
  $region30: #{convnet_forward.1} parent=0 // pred_check
    _
  $region31: #{convnet_forward.1} parent=0 // pred_check_branch
    %2908 = sbr.rel (0) target = $region33
  $region32: #{convnet_forward.1} parent=0 // pred_region
    _
  $region33: #{convnet_forward.1} parent=0 // pred_fallthru
    _
  // Predicated region
  $region34: #{convnet_forward.1} parent=0 // pred_check
    _
  $region35: #{convnet_forward.1} parent=0 // pred_check_branch
    %2910 = sbr.rel (0) target = $region37
  $region36: #{convnet_forward.1} parent=0 // pred_region
    _
  $region37: #{convnet_forward.1} parent=0 // pred_fallthru
    _

</llo_original>
